<compile_context>
chip_gen: v7x
topology: tpu7x:2x2x1
jax: 0.10.0
libtpu: 0.0.40
codegen_flags: <defaults>
</compile_context>

<pallas_src>
import functools

import numpy as np

import jax
import jax.numpy as jnp
from jax.experimental import pallas as pl
from jax.experimental.pallas import tpu as pltpu  # noqa: F401  (kept for TPU-specific tuning)

LANE = 128  # TPU lane width; feature AND node dims are padded to this.


# ----------------------------- Pallas kernel --------------------------------

def _gnn_fused_kernel(a_ref, x_ref, wl_ref, wr_ref, b_ref, o_ref, *, num_layers):
    """All SAGEConv layers fused; intermediates stay on-chip.

    a_ref  : (Np, Np)       bf16 row-normalized adjacency (mean aggregation)
    x_ref  : (Np, FP)       bf16 node features, zero-padded to FP=128 lanes
    wl_ref : (L, FP, FP)    bf16 per-layer W_l (pre-transposed, padded) -> applied to agg
    wr_ref : (L, FP, FP)    bf16 per-layer W_r (pre-transposed, padded) -> applied to x (root)
    b_ref  : (L, 1, FP)     f32 per-layer bias (padded)
    o_ref  : (Np, FP)       f32 output (padded; real rows/cols sliced in wrapper)
    """
    a = a_ref[...]          # bf16
    h = x_ref[...]          # bf16
    out = None
    for i in range(num_layers):
        # Mean-aggregate neighbor features: (Np, Np) @ (Np, FP) -> f32 (Np, FP)
        agg = jnp.dot(a, h, preferred_element_type=jnp.float32)
        # Two accumulated MXU dots (no concat materialization); accumulate f32.
        hf = (jnp.dot(agg.astype(jnp.bfloat16), wl_ref[i],
                      preferred_element_type=jnp.float32)
              + jnp.dot(h, wr_ref[i], preferred_element_type=jnp.float32)
              + b_ref[i])
        if i != num_layers - 1:
            hf = jnp.maximum(hf, 0.0)           # ReLU (f32 on VPU)
            # F.dropout(p=0.5, training=False) -> identity (eval mode)
            h = hf.astype(jnp.bfloat16)         # bf16 only as next-layer MXU input
        else:
            out = hf
    o_ref[...] = out.astype(o_ref.dtype)


def gnn_fused(adj, x_pad, wl, wr, bias):
    """Wrapper: fused multi-layer SAGE forward via one grid-less pallas_call."""
    n_pad, fp = x_pad.shape
    num_layers = wl.shape[0]
    kernel = functools.partial(_gnn_fused_kernel, num_layers=num_layers)

    flops = 2 * num_layers * (n_pad * n_pad * fp + 2 * n_pad * fp * fp)
    bytes_accessed = (adj.size * adj.dtype.itemsize
                      + x_pad.size * x_pad.dtype.itemsize
                      + wl.size * wl.dtype.itemsize
                      + wr.size * wr.dtype.itemsize
                      + bias.size * bias.dtype.itemsize
                      + n_pad * fp * 4)

    return pl.pallas_call(
        kernel,
        out_shape=jax.ShapeDtypeStruct((n_pad, fp), jnp.float32),
        in_specs=[
            pl.BlockSpec((n_pad, n_pad), lambda: (0, 0)),
            pl.BlockSpec((n_pad, fp), lambda: (0, 0)),
            pl.BlockSpec((num_layers, fp, fp), lambda: (0, 0, 0)),
            pl.BlockSpec((num_layers, fp, fp), lambda: (0, 0, 0)),
            pl.BlockSpec((num_layers, 1, fp), lambda: (0, 0, 0)),
        ],
        out_specs=pl.BlockSpec((n_pad, fp), lambda: (0, 0)),
        cost_estimate=pl.CostEstimate(flops=flops, transcendentals=0,
                                      bytes_accessed=bytes_accessed),
    )(adj, x_pad, wl, wr, bias)


# --------------------- One-time (per-graph / per-model) prep -----------------

def build_mean_adjacency(edge_index, num_nodes):
    """Dense row-normalized adjacency so that (A @ X)[i] = mean_{j->i} X[j]."""
    src, dst = edge_index[0], edge_index[1]
    a = jnp.zeros((num_nodes, num_nodes), jnp.float32).at[dst, src].add(1.0)
    deg = a.sum(axis=1, keepdims=True)
    return a / jnp.maximum(deg, 1.0)


def prepare_graph(edge_index, num_nodes):
    """Build the padded bf16 adjacency ONCE per graph (hoisted out of forward)."""
    n_pad = pl.cdiv(num_nodes, LANE) * LANE
    adj = build_mean_adjacency(edge_index, num_nodes)
    adj_pad = jnp.zeros((n_pad, n_pad), jnp.float32).at[:num_nodes, :num_nodes].set(adj)
    return adj_pad.astype(jnp.bfloat16)


def init_gnn_params(key, in_channels, hidden_channels, out_channels, num_layers):
    """Deterministic Glorot-style init; weights stored pre-transposed (Fin, Fout)."""
    dims = [in_channels] + [hidden_channels] * (num_layers - 1) + [out_channels]
    params = []
    for i in range(num_layers):
        f_in, f_out = dims[i], dims[i + 1]
        key, k1, k2 = jax.random.split(key, 3)
        scale = jnp.sqrt(6.0 / (f_in + f_out))
        w_l = jax.random.uniform(k1, (f_in, f_out), jnp.float32, -scale, scale)
        w_r = jax.random.uniform(k2, (f_in, f_out), jnp.float32, -scale, scale)
        b = jnp.zeros((f_out,), jnp.float32)
        params.append((w_l, w_r, b))
    return params


def prepare_params(params, fp=LANE):
    """Pack per-layer (W_l, W_r, b) ONCE (host-side) into padded constants."""
    num_layers = len(params)
    wl = np.zeros((num_layers, fp, fp), np.float32)
    wr = np.zeros((num_layers, fp, fp), np.float32)
    bias = np.zeros((num_layers, 1, fp), np.float32)
    for i, (w_l, w_r, b) in enumerate(params):
        f_in, f_out = w_l.shape
        wl[i, :f_in, :f_out] = np.asarray(w_l)
        wr[i, :f_in, :f_out] = np.asarray(w_r)
        bias[i, 0, :f_out] = np.asarray(b)
    return (jnp.asarray(wl, jnp.bfloat16),
            jnp.asarray(wr, jnp.bfloat16),
            jnp.asarray(bias, jnp.float32))


# ------------------------------- Forward -------------------------------------

@functools.partial(jax.jit, static_argnames=("out_channels",))
def gnn_forward(x, adj_pad, wl, wr, bias, *, out_channels):
    """GNN.forward (eval mode): pad x, run the fused kernel, slice the result."""
    n, in_c = x.shape
    n_pad = adj_pad.shape[0]
    fp = wl.shape[-1]
    x_pad = jnp.zeros((n_pad, fp), jnp.bfloat16).at[:n, :in_c].set(
        x.astype(jnp.bfloat16))
    out_pad = gnn_fused(adj_pad, x_pad, wl, wr, bias)
    return out_pad[:n, :out_channels]


def gnn_forward_ref(x, edge_index, params):
    """Pure-JAX f32 reference for correctness checking."""
    num_layers = len(params)
    adj = build_mean_adjacency(edge_index, x.shape[0])
    for i, (w_l, w_r, b) in enumerate(params):
        x = adj @ x @ w_l + x @ w_r + b[None, :]
        if i != num_layers - 1:
            x = jnp.maximum(x, 0.0)
    return x


# --------------------------------- Main --------------------------------------

if __name__ == "__main__":
    N = 64            # nodes
    E = 256           # edges
    IN_C = 32
    HIDDEN_C = 32
    OUT_C = 8
    NUM_LAYERS = 3

    key = jax.random.PRNGKey(0)
    k_x, k_src, k_dst, k_p = jax.random.split(key, 4)

    x = jax.random.normal(k_x, (N, IN_C), jnp.float32)
    src = jax.random.randint(k_src, (E,), 0, N, jnp.int32)
    dst = jax.random.randint(k_dst, (E,), 0, N, jnp.int32)
    edge_index = jnp.stack([src, dst], axis=0)  # (2, E), row 0 = src, row 1 = dst

    params = init_gnn_params(k_p, IN_C, HIDDEN_C, OUT_C, NUM_LAYERS)

    # One-time prep (hoisted out of the per-forward hot path).
    adj_pad = prepare_graph(edge_index, N)
    wl, wr, bias = prepare_params(params)

    out = gnn_forward(x, adj_pad, wl, wr, bias, out_channels=OUT_C)
    out = jax.block_until_ready(out)

    ref = gnn_forward_ref(x, edge_index, params)
    assert out.shape == (N, OUT_C)
    # bf16 MXU inputs (f32 accumulation) -> loosened tolerance vs f32 reference.
    assert jnp.allclose(out, ref, atol=5e-2, rtol=5e-2), "mismatch vs JAX reference"

    print("KERNEL_OK")
</pallas_src>

<mosaic_0001>
module attributes {stable_mosaic.version = 11 : i64} {
  func.func @_gnn_fused_kernel(%arg0: memref<128x128xbf16, #tpu.memory_space<vmem>>, %arg1: memref<128x128xbf16, #tpu.memory_space<vmem>>, %arg2: memref<3x128x128xbf16, #tpu.memory_space<vmem>>, %arg3: memref<3x128x128xbf16, #tpu.memory_space<vmem>>, %arg4: memref<3x1x128xf32, #tpu.memory_space<vmem>>, %arg5: memref<128x128xf32, #tpu.memory_space<vmem>>) attributes {dimension_semantics = [], scalar_prefetch = 0 : i64, scratch_operands = 0 : i64, tpu.core_type = #tpu.core_type<tc>} {
    %c0 = arith.constant 0 : index
    %c0_0 = arith.constant 0 : index
    %0 = vector.load %arg0[%c0, %c0_0] : memref<128x128xbf16, #tpu.memory_space<vmem>>, vector<128x128xbf16>
    %c0_1 = arith.constant 0 : index
    %c0_2 = arith.constant 0 : index
    %1 = vector.load %arg1[%c0_1, %c0_2] : memref<128x128xbf16, #tpu.memory_space<vmem>>, vector<128x128xbf16>
    %cst = arith.constant dense<0.000000e+00> : vector<128x128xf32>
    %2 = tpu.matmul %0, %1, %cst {dimension_numbers = #tpu.dot_dimension_numbers<[1], [0], [0], [1], [0, 0, 1, 1], [], []>} : vector<128x128xbf16>, vector<128x128xbf16>, vector<128x128xf32> -> vector<128x128xf32>
    %3 = arith.truncf %2 : vector<128x128xf32> to vector<128x128xbf16>
    %c0_3 = arith.constant 0 : index
    %c0_4 = arith.constant 0 : index
    %c0_5 = arith.constant 0 : index
    %4 = vector.load %arg2[%c0_3, %c0_4, %c0_5] : memref<3x128x128xbf16, #tpu.memory_space<vmem>>, vector<1x128x128xbf16>
    %5 = vector.shape_cast %4 : vector<1x128x128xbf16> to vector<128x128xbf16>
    %cst_6 = arith.constant dense<0.000000e+00> : vector<128x128xf32>
    %6 = tpu.matmul %3, %5, %cst_6 {dimension_numbers = #tpu.dot_dimension_numbers<[1], [0], [0], [1], [0, 0, 1, 1], [], []>} : vector<128x128xbf16>, vector<128x128xbf16>, vector<128x128xf32> -> vector<128x128xf32>
    %c0_7 = arith.constant 0 : index
    %c0_8 = arith.constant 0 : index
    %c0_9 = arith.constant 0 : index
    %7 = vector.load %arg3[%c0_7, %c0_8, %c0_9] : memref<3x128x128xbf16, #tpu.memory_space<vmem>>, vector<1x128x128xbf16>
    %8 = vector.shape_cast %7 : vector<1x128x128xbf16> to vector<128x128xbf16>
    %cst_10 = arith.constant dense<0.000000e+00> : vector<128x128xf32>
    %9 = tpu.matmul %1, %8, %cst_10 {dimension_numbers = #tpu.dot_dimension_numbers<[1], [0], [0], [1], [0, 0, 1, 1], [], []>} : vector<128x128xbf16>, vector<128x128xbf16>, vector<128x128xf32> -> vector<128x128xf32>
    %10 = arith.addf %6, %9 : vector<128x128xf32>
    %c0_11 = arith.constant 0 : index
    %c0_12 = arith.constant 0 : index
    %c0_13 = arith.constant 0 : index
    %11 = vector.load %arg4[%c0_11, %c0_12, %c0_13] : memref<3x1x128xf32, #tpu.memory_space<vmem>>, vector<1x1x128xf32>
    %12 = vector.shape_cast %11 : vector<1x1x128xf32> to vector<1x128xf32>
    %13 = vector.broadcast %12 : vector<1x128xf32> to vector<128x128xf32>
    %14 = arith.addf %10, %13 : vector<128x128xf32>
    %cst_14 = arith.constant 0.000000e+00 : f32
    %15 = vector.broadcast %cst_14 : f32 to vector<128x128xf32>
    %16 = arith.maximumf %14, %15 : vector<128x128xf32>
    %17 = arith.truncf %16 : vector<128x128xf32> to vector<128x128xbf16>
    %cst_15 = arith.constant dense<0.000000e+00> : vector<128x128xf32>
    %18 = tpu.matmul %0, %17, %cst_15 {dimension_numbers = #tpu.dot_dimension_numbers<[1], [0], [0], [1], [0, 0, 1, 1], [], []>} : vector<128x128xbf16>, vector<128x128xbf16>, vector<128x128xf32> -> vector<128x128xf32>
    %19 = arith.truncf %18 : vector<128x128xf32> to vector<128x128xbf16>
    %c1 = arith.constant 1 : index
    %c0_16 = arith.constant 0 : index
    %c0_17 = arith.constant 0 : index
    %20 = vector.load %arg2[%c1, %c0_16, %c0_17] : memref<3x128x128xbf16, #tpu.memory_space<vmem>>, vector<1x128x128xbf16>
    %21 = vector.shape_cast %20 : vector<1x128x128xbf16> to vector<128x128xbf16>
    %cst_18 = arith.constant dense<0.000000e+00> : vector<128x128xf32>
    %22 = tpu.matmul %19, %21, %cst_18 {dimension_numbers = #tpu.dot_dimension_numbers<[1], [0], [0], [1], [0, 0, 1, 1], [], []>} : vector<128x128xbf16>, vector<128x128xbf16>, vector<128x128xf32> -> vector<128x128xf32>
    %c1_19 = arith.constant 1 : index
    %c0_20 = arith.constant 0 : index
    %c0_21 = arith.constant 0 : index
    %23 = vector.load %arg3[%c1_19, %c0_20, %c0_21] : memref<3x128x128xbf16, #tpu.memory_space<vmem>>, vector<1x128x128xbf16>
    %24 = vector.shape_cast %23 : vector<1x128x128xbf16> to vector<128x128xbf16>
    %cst_22 = arith.constant dense<0.000000e+00> : vector<128x128xf32>
    %25 = tpu.matmul %17, %24, %cst_22 {dimension_numbers = #tpu.dot_dimension_numbers<[1], [0], [0], [1], [0, 0, 1, 1], [], []>} : vector<128x128xbf16>, vector<128x128xbf16>, vector<128x128xf32> -> vector<128x128xf32>
    %26 = arith.addf %22, %25 : vector<128x128xf32>
    %c1_23 = arith.constant 1 : index
    %c0_24 = arith.constant 0 : index
    %c0_25 = arith.constant 0 : index
    %27 = vector.load %arg4[%c1_23, %c0_24, %c0_25] : memref<3x1x128xf32, #tpu.memory_space<vmem>>, vector<1x1x128xf32>
    %28 = vector.shape_cast %27 : vector<1x1x128xf32> to vector<1x128xf32>
    %29 = vector.broadcast %28 : vector<1x128xf32> to vector<128x128xf32>
    %30 = arith.addf %26, %29 : vector<128x128xf32>
    %cst_26 = arith.constant 0.000000e+00 : f32
    %31 = vector.broadcast %cst_26 : f32 to vector<128x128xf32>
    %32 = arith.maximumf %30, %31 : vector<128x128xf32>
    %33 = arith.truncf %32 : vector<128x128xf32> to vector<128x128xbf16>
    %cst_27 = arith.constant dense<0.000000e+00> : vector<128x128xf32>
    %34 = tpu.matmul %0, %33, %cst_27 {dimension_numbers = #tpu.dot_dimension_numbers<[1], [0], [0], [1], [0, 0, 1, 1], [], []>} : vector<128x128xbf16>, vector<128x128xbf16>, vector<128x128xf32> -> vector<128x128xf32>
    %35 = arith.truncf %34 : vector<128x128xf32> to vector<128x128xbf16>
    %c2 = arith.constant 2 : index
    %c0_28 = arith.constant 0 : index
    %c0_29 = arith.constant 0 : index
    %36 = vector.load %arg2[%c2, %c0_28, %c0_29] : memref<3x128x128xbf16, #tpu.memory_space<vmem>>, vector<1x128x128xbf16>
    %37 = vector.shape_cast %36 : vector<1x128x128xbf16> to vector<128x128xbf16>
    %cst_30 = arith.constant dense<0.000000e+00> : vector<128x128xf32>
    %38 = tpu.matmul %35, %37, %cst_30 {dimension_numbers = #tpu.dot_dimension_numbers<[1], [0], [0], [1], [0, 0, 1, 1], [], []>} : vector<128x128xbf16>, vector<128x128xbf16>, vector<128x128xf32> -> vector<128x128xf32>
    %c2_31 = arith.constant 2 : index
    %c0_32 = arith.constant 0 : index
    %c0_33 = arith.constant 0 : index
    %39 = vector.load %arg3[%c2_31, %c0_32, %c0_33] : memref<3x128x128xbf16, #tpu.memory_space<vmem>>, vector<1x128x128xbf16>
    %40 = vector.shape_cast %39 : vector<1x128x128xbf16> to vector<128x128xbf16>
    %cst_34 = arith.constant dense<0.000000e+00> : vector<128x128xf32>
    %41 = tpu.matmul %33, %40, %cst_34 {dimension_numbers = #tpu.dot_dimension_numbers<[1], [0], [0], [1], [0, 0, 1, 1], [], []>} : vector<128x128xbf16>, vector<128x128xbf16>, vector<128x128xf32> -> vector<128x128xf32>
    %42 = arith.addf %38, %41 : vector<128x128xf32>
    %c2_35 = arith.constant 2 : index
    %c0_36 = arith.constant 0 : index
    %c0_37 = arith.constant 0 : index
    %43 = vector.load %arg4[%c2_35, %c0_36, %c0_37] : memref<3x1x128xf32, #tpu.memory_space<vmem>>, vector<1x1x128xf32>
    %44 = vector.shape_cast %43 : vector<1x1x128xf32> to vector<1x128xf32>
    %45 = vector.broadcast %44 : vector<1x128xf32> to vector<128x128xf32>
    %46 = arith.addf %42, %45 : vector<128x128xf32>
    %c0_38 = arith.constant 0 : index
    %c0_39 = arith.constant 0 : index
    %47 = vector.load %arg5[%c0_38, %c0_39] : memref<128x128xf32, #tpu.memory_space<vmem>>, vector<128x128xf32>
    tpu.vector_store %arg5[%c0_38, %c0_39], %46 {strides = array<i32>} : memref<128x128xf32, #tpu.memory_space<vmem>>, vector<128x128xf32>,
    return
  }
}

</mosaic_0001>

<llo_original>
// kernel: gnn_forward.1
$region0: #{gnn_forward.1}
  #allocation0 [shape = 'u32[]', space=smem, size = 0x4, offset = 0x4, fixed_abs, tag = 'smem constant byte address 0x4 - core index']
  #allocation1 [shape = 'u32[144,128]{1,0:T(1,128)}', space=vmem, size = 0x12000, scoped, tag = 'internal scratch']
  %s0 = inlined_call_operand.hbm [shape: bf16[128,128], index: 0, kind: input, shape index: {}]
  %s1 = inlined_call_operand.vmem [shape: bf16[128,128], index: 1, kind: input, shape index: {}]
  %s2 = inlined_call_operand.vmem [shape: bf16[3,128,128], index: 2, kind: input, shape index: {}]
  %s3 = inlined_call_operand.hbm [shape: bf16[3,128,128], index: 3, kind: input, shape index: {}]
  %s4 = inlined_call_operand.vmem [shape: f32[3,1,128], index: 4, kind: input, shape index: {}]
  %s5 = inlined_call_operand.vmem [shape: f32[128,128], index: 5, kind: output, shape index: {}]
  %s6 = sld [smem:[#allocation0]]
  $region38: #{gnn_forward.1} parent=0
    _
  %s8 = ssub.s32 1, %s6
  %s9 = scalar_select 0, %s8, %s6
  $region1: #{gnn_forward.1} parent=0
    #allocation2 [shape = 'u8[32768]{0}', space=vmem, size = 0x8000, scoped, tag = 'input window, operand 0, single buffered']
    #allocation3 [shape = 's32[1]{0}', space=sflag, size = 0x4, scoped, tag = 'scoped memory for gnn_forward.1']
    #allocation4 [shape = 'u8[98304]{0}', space=vmem, size = 0x18000, scoped, tag = 'input window, operand 3, single buffered']
    #allocation5 [shape = 's32[1]{0}', space=sflag, size = 0x4, scoped, tag = 'scoped memory for gnn_forward.1']
    %10 = vsyncpa [#allocation3], 0
    %11 = vsyncpa [#allocation5], 0
    // Predicated region
    $region2: #{gnn_forward.1} parent=1 // pred_check
      _
    $region3: #{gnn_forward.1} parent=1 // pred_check_branch
      %13 = sbr.rel (0) target = $region5
    $region4: #{gnn_forward.1} parent=1 // pred_region
      %s15 = ssub.s32 1024, 1024
      %16 = vsyncadd [#allocation3], %s15
      %s17 = sshll.u32 [#allocation2], 4
      %s18 = int_to_ptr.vmem [resolvable:$true] %s17
      %23 = dma.hbm_to_vmem [thread:$0]  %s0, 1024, %s18, [#allocation3], 64, 64, 4
    $region5: #{gnn_forward.1} parent=1 // pred_fallthru
      _
    // Predicated region
    $region6: #{gnn_forward.1} parent=1 // pred_check
      _
    $region7: #{gnn_forward.1} parent=1 // pred_check_branch
      %25 = sbr.rel (0) target = $region9
    $region8: #{gnn_forward.1} parent=1 // pred_region
      _
    $region9: #{gnn_forward.1} parent=1 // pred_fallthru
      _
    // Predicated region
    $region10: #{gnn_forward.1} parent=1 // pred_check
      _
    $region11: #{gnn_forward.1} parent=1 // pred_check_branch
      %27 = sbr.rel (0) target = $region13
    $region12: #{gnn_forward.1} parent=1 // pred_region
      _
    $region13: #{gnn_forward.1} parent=1 // pred_fallthru
      _
    // Predicated region
    $region14: #{gnn_forward.1} parent=1 // pred_check
      _
    $region15: #{gnn_forward.1} parent=1 // pred_check_branch
      %29 = sbr.rel (0) target = $region17
    $region16: #{gnn_forward.1} parent=1 // pred_region
      %s31 = ssub.s32 3072, 3072
      %32 = vsyncadd [#allocation5], %s31
      %s33 = sshll.u32 [#allocation4], 4
      %s34 = int_to_ptr.vmem [resolvable:$true] %s33
      %39 = dma.hbm_to_vmem [thread:$0]  %s3, 3072, %s34, [#allocation5], 64, 64, 4
    $region17: #{gnn_forward.1} parent=1 // pred_fallthru
      _
    // Predicated region
    $region18: #{gnn_forward.1} parent=1 // pred_check
      _
    $region19: #{gnn_forward.1} parent=1 // pred_check_branch
      %41 = sbr.rel (0) target = $region21
    $region20: #{gnn_forward.1} parent=1 // pred_region
      _
    $region21: #{gnn_forward.1} parent=1 // pred_fallthru
      _
    // Predicated region
    $region22: #{gnn_forward.1} parent=1 // pred_check
      _
    $region23: #{gnn_forward.1} parent=1 // pred_check_branch
      %43 = sbr.rel (0) target = $region25
    $region24: #{gnn_forward.1} parent=1 // pred_region
      %44 = dma.done [#allocation3], 1024
    $region25: #{gnn_forward.1} parent=1 // pred_fallthru
      _
    // Predicated region
    $region26: #{gnn_forward.1} parent=1 // pred_check
      _
    $region27: #{gnn_forward.1} parent=1 // pred_check_branch
      %46 = sbr.rel (0) target = $region29
    $region28: #{gnn_forward.1} parent=1 // pred_region
      %47 = dma.done [#allocation5], 3072
    $region29: #{gnn_forward.1} parent=1 // pred_fallthru
      _
    %v49 = vld [vmem:[#allocation2] sm:$0xf]
    %v50 = vld [vmem:[#allocation2 + $0x4] sm:$0xf]
    %v51 = vld [vmem:[#allocation2 + $0x8] sm:$0xf]
    %v52 = vld [vmem:[#allocation2 + $0xc] sm:$0xf]
    %v53 = vld [vmem:[#allocation2 + $0x10] sm:$0xf]
    %v54 = vld [vmem:[#allocation2 + $0x14] sm:$0xf]
    %v55 = vld [vmem:[#allocation2 + $0x18] sm:$0xf]
    %v56 = vld [vmem:[#allocation2 + $0x1c] sm:$0xf]
    %v57 = vld [vmem:[#allocation2 + $0x20] sm:$0xf]
    %v58 = vld [vmem:[#allocation2 + $0x24] sm:$0xf]
    %v59 = vld [vmem:[#allocation2 + $0x28] sm:$0xf]
    %v60 = vld [vmem:[#allocation2 + $0x2c] sm:$0xf]
    %v61 = vld [vmem:[#allocation2 + $0x30] sm:$0xf]
    %v62 = vld [vmem:[#allocation2 + $0x34] sm:$0xf]
    %v63 = vld [vmem:[#allocation2 + $0x38] sm:$0xf]
    %v64 = vld [vmem:[#allocation2 + $0x3c] sm:$0xf]
    %v65 = vld [vmem:[%s1] sm:$0xf]
    %v66 = vld [vmem:[%s1 + $0x4] sm:$0xf]
    %v67 = vld [vmem:[%s1 + $0x8] sm:$0xf]
    %v68 = vld [vmem:[%s1 + $0xc] sm:$0xf]
    %v69 = vld [vmem:[%s1 + $0x10] sm:$0xf]
    %v70 = vld [vmem:[%s1 + $0x14] sm:$0xf]
    %v71 = vld [vmem:[%s1 + $0x18] sm:$0xf]
    %v72 = vld [vmem:[%s1 + $0x1c] sm:$0xf]
    %v73 = vld [vmem:[%s1 + $0x20] sm:$0xf]
    %v74 = vld [vmem:[%s1 + $0x24] sm:$0xf]
    %v75 = vld [vmem:[%s1 + $0x28] sm:$0xf]
    %v76 = vld [vmem:[%s1 + $0x2c] sm:$0xf]
    %v77 = vld [vmem:[%s1 + $0x30] sm:$0xf]
    %v78 = vld [vmem:[%s1 + $0x34] sm:$0xf]
    %v79 = vld [vmem:[%s1 + $0x38] sm:$0xf]
    %v80 = vld [vmem:[%s1 + $0x3c] sm:$0xf]
    %v97 = vunpack.c.l.b16 %v49
    %v98 = vunpack.c.l.b16 %v50
    %v99 = vunpack.c.l.b16 %v51
    %v100 = vunpack.c.l.b16 %v52
    %v101 = vunpack.c.l.b16 %v53
    %v102 = vunpack.c.l.b16 %v54
    %v103 = vunpack.c.l.b16 %v55
    %v104 = vunpack.c.l.b16 %v56
    %v105 = vunpack.c.l.b16 %v57
    %v106 = vunpack.c.l.b16 %v58
    %v107 = vunpack.c.l.b16 %v59
    %v108 = vunpack.c.l.b16 %v60
    %v109 = vunpack.c.l.b16 %v61
    %v110 = vunpack.c.l.b16 %v62
    %v111 = vunpack.c.l.b16 %v63
    %v112 = vunpack.c.l.b16 %v64
    %v113 = vpack.c.b16 %v98, %v97
    %v114 = vpack.c.b16 %v100, %v99
    %v115 = vpack.c.b16 %v102, %v101
    %v116 = vpack.c.b16 %v104, %v103
    %v117 = vpack.c.b16 %v106, %v105
    %v118 = vpack.c.b16 %v108, %v107
    %v119 = vpack.c.b16 %v110, %v109
    %v120 = vpack.c.b16 %v112, %v111
    %v145 = vunpack.c.l.b16 %v65
    %v146 = vunpack.c.l.b16 %v66
    %v147 = vunpack.c.l.b16 %v67
    %v148 = vunpack.c.l.b16 %v68
    %v149 = vunpack.c.l.b16 %v69
    %v150 = vunpack.c.l.b16 %v70
    %v151 = vunpack.c.l.b16 %v71
    %v152 = vunpack.c.l.b16 %v72
    %v153 = vunpack.c.l.b16 %v73
    %v154 = vunpack.c.l.b16 %v74
    %v155 = vunpack.c.l.b16 %v75
    %v156 = vunpack.c.l.b16 %v76
    %v157 = vunpack.c.l.b16 %v77
    %v158 = vunpack.c.l.b16 %v78
    %v159 = vunpack.c.l.b16 %v79
    %v160 = vunpack.c.l.b16 %v80
    %v161 = vpack.c.b16 %v146, %v145
    %v162 = vpack.c.b16 %v148, %v147
    %v163 = vpack.c.b16 %v150, %v149
    %v164 = vpack.c.b16 %v152, %v151
    %v165 = vpack.c.b16 %v154, %v153
    %v166 = vpack.c.b16 %v156, %v155
    %v167 = vpack.c.b16 %v158, %v157
    %v168 = vpack.c.b16 %v160, %v159
    %177 = vmatprep.subr.bf16.mxu0 0
    %178 = vmatpush1.bf16.msra.mxu0 %v161
    %179 = vmatprep.subr.bf16.mxu0 0
    %180 = vmatpush1.bf16.msra.mxu0 %v162
    %181 = vmatprep.subr.bf16.mxu0 0
    %182 = vmatpush1.bf16.msra.mxu0 %v163
    %183 = vmatprep.subr.bf16.mxu0 0
    %184 = vmatpush1.bf16.msra.mxu0 %v164
    %185 = vmatprep.subr.bf16.mxu0 0
    %186 = vmatpush1.bf16.msra.mxu0 %v165
    %187 = vmatprep.subr.bf16.mxu0 0
    %188 = vmatpush1.bf16.msra.mxu0 %v166
    %189 = vmatprep.subr.bf16.mxu0 0
    %190 = vmatpush1.bf16.msra.mxu0 %v167
    %191 = vmatprep.subr.bf16.mxu0 0
    %192 = vmatpush1.bf16.msra.mxu0 %v168
    %193 = vmatprep.subr.bf16.mxu0 0
    %194 = vmatpush1.bf16.msra.mxu0 0
    %195 = vmatprep.subr.bf16.mxu0 0
    %196 = vmatpush1.bf16.msra.mxu0 0
    %197 = vmatprep.subr.bf16.mxu0 0
    %198 = vmatpush1.bf16.msra.mxu0 0
    %199 = vmatprep.subr.bf16.mxu0 0
    %200 = vmatpush1.bf16.msra.mxu0 0
    %201 = vmatprep.subr.bf16.mxu0 0
    %202 = vmatpush1.bf16.msra.mxu0 0
    %203 = vmatprep.subr.bf16.mxu0 0
    %204 = vmatpush1.bf16.msra.mxu0 0
    %205 = vmatprep.subr.bf16.mxu0 0
    %206 = vmatpush1.bf16.msra.mxu0 0
    %207 = vmatprep.subr.bf16.mxu0 0
    %208 = vmatpush1.bf16.msra.mxu0 0
    %209 = vmatprep.mubr.bf16.mxu0 0
    %210 = vmatmul.mubr.bf16.gmra.mrb[0].mxu0 %v113
    %v211 = vpop.f32.mrb[0].mxu0
    %v212 = vadd.f32 0.0, %v211
    %v213 = vpop.f32.mrb[0].mxu0
    %v214 = vpop.f32.mrb[0].mxu0
    %v215 = vadd.f32 0.0, %v214
    %v216 = vpop.f32.mrb[0].mxu0
    %217 = vmatprep.mubr.bf16.mxu0 0
    %218 = vmatmul.mubr.bf16.gmra.mrb[0].mxu0 %v114
    %v219 = vpop.f32.mrb[0].mxu0
    %v220 = vadd.f32 0.0, %v219
    %v221 = vpop.f32.mrb[0].mxu0
    %v222 = vpop.f32.mrb[0].mxu0
    %v223 = vadd.f32 0.0, %v222
    %v224 = vpop.f32.mrb[0].mxu0
    %225 = vmatprep.mubr.bf16.mxu0 0
    %226 = vmatmul.mubr.bf16.gmra.mrb[0].mxu0 %v115
    %v227 = vpop.f32.mrb[0].mxu0
    %v228 = vadd.f32 0.0, %v227
    %v229 = vpop.f32.mrb[0].mxu0
    %v230 = vpop.f32.mrb[0].mxu0
    %v231 = vadd.f32 0.0, %v230
    %v232 = vpop.f32.mrb[0].mxu0
    %233 = vmatprep.mubr.bf16.mxu0 0
    %234 = vmatmul.mubr.bf16.gmra.mrb[0].mxu0 %v116
    %v235 = vpop.f32.mrb[0].mxu0
    %v236 = vadd.f32 0.0, %v235
    %v237 = vpop.f32.mrb[0].mxu0
    %v238 = vpop.f32.mrb[0].mxu0
    %v239 = vadd.f32 0.0, %v238
    %v240 = vpop.f32.mrb[0].mxu0
    %241 = vmatprep.mubr.bf16.mxu0 0
    %242 = vmatmul.mubr.bf16.gmra.mrb[0].mxu0 %v117
    %v243 = vpop.f32.mrb[0].mxu0
    %v244 = vadd.f32 0.0, %v243
    %v245 = vpop.f32.mrb[0].mxu0
    %v246 = vpop.f32.mrb[0].mxu0
    %v247 = vadd.f32 0.0, %v246
    %v248 = vpop.f32.mrb[0].mxu0
    %249 = vmatprep.mubr.bf16.mxu0 0
    %250 = vmatmul.mubr.bf16.gmra.mrb[0].mxu0 %v118
    %v251 = vpop.f32.mrb[0].mxu0
    %v252 = vadd.f32 0.0, %v251
    %v253 = vpop.f32.mrb[0].mxu0
    %v254 = vpop.f32.mrb[0].mxu0
    %v255 = vadd.f32 0.0, %v254
    %v256 = vpop.f32.mrb[0].mxu0
    %257 = vmatprep.mubr.bf16.mxu0 0
    %258 = vmatmul.mubr.bf16.gmra.mrb[0].mxu0 %v119
    %v259 = vpop.f32.mrb[0].mxu0
    %v260 = vadd.f32 0.0, %v259
    %v261 = vpop.f32.mrb[0].mxu0
    %v262 = vpop.f32.mrb[0].mxu0
    %v263 = vadd.f32 0.0, %v262
    %v264 = vpop.f32.mrb[0].mxu0
    %265 = vmatprep.mubr.bf16.mxu0 0
    %266 = vmatmul.mubr.bf16.gmra.mrb[0].mxu0 %v120
    %v267 = vpop.f32.mrb[0].mxu0
    %v268 = vadd.f32 0.0, %v267
    %v269 = vpop.f32.mrb[0].mxu0
    %v270 = vpop.f32.mrb[0].mxu0
    %v271 = vadd.f32 0.0, %v270
    %v272 = vpop.f32.mrb[0].mxu0
    %273 = vdwg.mxu0
    %v274 = vpack.c.bf16 %v215, %v212
    %v275 = vpack.c.bf16 %v223, %v220
    %v276 = vpack.c.bf16 %v231, %v228
    %v277 = vpack.c.bf16 %v239, %v236
    %v278 = vpack.c.bf16 %v247, %v244
    %v279 = vpack.c.bf16 %v255, %v252
    %v280 = vpack.c.bf16 %v263, %v260
    %v281 = vpack.c.bf16 %v271, %v268
    %v282 = vld [vmem:[%s2] sm:$0xf]
    %v283 = vld [vmem:[%s2 + $0x4] sm:$0xf]
    %v284 = vld [vmem:[%s2 + $0x8] sm:$0xf]
    %v285 = vld [vmem:[%s2 + $0xc] sm:$0xf]
    %v286 = vld [vmem:[%s2 + $0x10] sm:$0xf]
    %v287 = vld [vmem:[%s2 + $0x14] sm:$0xf]
    %v288 = vld [vmem:[%s2 + $0x18] sm:$0xf]
    %v289 = vld [vmem:[%s2 + $0x1c] sm:$0xf]
    %v290 = vld [vmem:[%s2 + $0x20] sm:$0xf]
    %v291 = vld [vmem:[%s2 + $0x24] sm:$0xf]
    %v292 = vld [vmem:[%s2 + $0x28] sm:$0xf]
    %v293 = vld [vmem:[%s2 + $0x2c] sm:$0xf]
    %v294 = vld [vmem:[%s2 + $0x30] sm:$0xf]
    %v295 = vld [vmem:[%s2 + $0x34] sm:$0xf]
    %v296 = vld [vmem:[%s2 + $0x38] sm:$0xf]
    %v297 = vld [vmem:[%s2 + $0x3c] sm:$0xf]
    %v298 = vld [vmem:[#allocation4] sm:$0xf]
    %v299 = vld [vmem:[#allocation4 + $0x4] sm:$0xf]
    %v300 = vld [vmem:[#allocation4 + $0x8] sm:$0xf]
    %v301 = vld [vmem:[#allocation4 + $0xc] sm:$0xf]
    %v302 = vld [vmem:[#allocation4 + $0x10] sm:$0xf]
    %v303 = vld [vmem:[#allocation4 + $0x14] sm:$0xf]
    %v304 = vld [vmem:[#allocation4 + $0x18] sm:$0xf]
    %v305 = vld [vmem:[#allocation4 + $0x1c] sm:$0xf]
    %v306 = vld [vmem:[#allocation4 + $0x20] sm:$0xf]
    %v307 = vld [vmem:[#allocation4 + $0x24] sm:$0xf]
    %v308 = vld [vmem:[#allocation4 + $0x28] sm:$0xf]
    %v309 = vld [vmem:[#allocation4 + $0x2c] sm:$0xf]
    %v310 = vld [vmem:[#allocation4 + $0x30] sm:$0xf]
    %v311 = vld [vmem:[#allocation4 + $0x34] sm:$0xf]
    %v312 = vld [vmem:[#allocation4 + $0x38] sm:$0xf]
    %v313 = vld [vmem:[#allocation4 + $0x3c] sm:$0xf]
    %v330 = vunpack.c.l.b16 %v298
    %v331 = vunpack.c.l.b16 %v299
    %v332 = vunpack.c.l.b16 %v300
    %v333 = vunpack.c.l.b16 %v301
    %v334 = vunpack.c.l.b16 %v302
    %v335 = vunpack.c.l.b16 %v303
    %v336 = vunpack.c.l.b16 %v304
    %v337 = vunpack.c.l.b16 %v305
    %v338 = vunpack.c.l.b16 %v306
    %v339 = vunpack.c.l.b16 %v307
    %v340 = vunpack.c.l.b16 %v308
    %v341 = vunpack.c.l.b16 %v309
    %v342 = vunpack.c.l.b16 %v310
    %v343 = vunpack.c.l.b16 %v311
    %v344 = vunpack.c.l.b16 %v312
    %v345 = vunpack.c.l.b16 %v313
    %v346 = vpack.c.b16 %v331, %v330
    %v347 = vpack.c.b16 %v333, %v332
    %v348 = vpack.c.b16 %v335, %v334
    %v349 = vpack.c.b16 %v337, %v336
    %v350 = vpack.c.b16 %v339, %v338
    %v351 = vpack.c.b16 %v341, %v340
    %v352 = vpack.c.b16 %v343, %v342
    %v353 = vpack.c.b16 %v345, %v344
    %362 = vmatprep.subr.bf16.mxu0 0
    %363 = vmatpush1.bf16.msra.mxu0 %v346
    %364 = vmatprep.subr.bf16.mxu0 0
    %365 = vmatpush1.bf16.msra.mxu0 %v347
    %366 = vmatprep.subr.bf16.mxu0 0
    %367 = vmatpush1.bf16.msra.mxu0 %v348
    %368 = vmatprep.subr.bf16.mxu0 0
    %369 = vmatpush1.bf16.msra.mxu0 %v349
    %370 = vmatprep.subr.bf16.mxu0 0
    %371 = vmatpush1.bf16.msra.mxu0 %v350
    %372 = vmatprep.subr.bf16.mxu0 0
    %373 = vmatpush1.bf16.msra.mxu0 %v351
    %374 = vmatprep.subr.bf16.mxu0 0
    %375 = vmatpush1.bf16.msra.mxu0 %v352
    %376 = vmatprep.subr.bf16.mxu0 0
    %377 = vmatpush1.bf16.msra.mxu0 %v353
    %378 = vmatprep.subr.bf16.mxu0 0
    %379 = vmatpush1.bf16.msra.mxu0 0
    %380 = vmatprep.subr.bf16.mxu0 0
    %381 = vmatpush1.bf16.msra.mxu0 0
    %382 = vmatprep.subr.bf16.mxu0 0
    %383 = vmatpush1.bf16.msra.mxu0 0
    %384 = vmatprep.subr.bf16.mxu0 0
    %385 = vmatpush1.bf16.msra.mxu0 0
    %386 = vmatprep.subr.bf16.mxu0 0
    %387 = vmatpush1.bf16.msra.mxu0 0
    %388 = vmatprep.subr.bf16.mxu0 0
    %389 = vmatpush1.bf16.msra.mxu0 0
    %390 = vmatprep.subr.bf16.mxu0 0
    %391 = vmatpush1.bf16.msra.mxu0 0
    %392 = vmatprep.subr.bf16.mxu0 0
    %393 = vmatpush1.bf16.msra.mxu0 0
    %394 = vmatprep.mubr.bf16.mxu0 0
    %395 = vmatmul.mubr.bf16.gmra.mrb[0].mxu0 %v161
    %v396 = vpop.f32.mrb[0].mxu0
    %v397 = vadd.f32 0.0, %v396
    %v398 = vpop.f32.mrb[0].mxu0
    %v399 = vpop.f32.mrb[0].mxu0
    %v400 = vadd.f32 0.0, %v399
    %v401 = vpop.f32.mrb[0].mxu0
    %402 = vmatprep.mubr.bf16.mxu0 0
    %403 = vmatmul.mubr.bf16.gmra.mrb[0].mxu0 %v162
    %v404 = vpop.f32.mrb[0].mxu0
    %v405 = vadd.f32 0.0, %v404
    %v406 = vpop.f32.mrb[0].mxu0
    %v407 = vpop.f32.mrb[0].mxu0
    %v408 = vadd.f32 0.0, %v407
    %v409 = vpop.f32.mrb[0].mxu0
    %410 = vmatprep.mubr.bf16.mxu0 0
    %411 = vmatmul.mubr.bf16.gmra.mrb[0].mxu0 %v163
    %v412 = vpop.f32.mrb[0].mxu0
    %v413 = vadd.f32 0.0, %v412
    %v414 = vpop.f32.mrb[0].mxu0
    %v415 = vpop.f32.mrb[0].mxu0
    %v416 = vadd.f32 0.0, %v415
    %v417 = vpop.f32.mrb[0].mxu0
    %418 = vmatprep.mubr.bf16.mxu0 0
    %419 = vmatmul.mubr.bf16.gmra.mrb[0].mxu0 %v164
    %v420 = vpop.f32.mrb[0].mxu0
    %v421 = vadd.f32 0.0, %v420
    %v422 = vpop.f32.mrb[0].mxu0
    %v423 = vpop.f32.mrb[0].mxu0
    %v424 = vadd.f32 0.0, %v423
    %v425 = vpop.f32.mrb[0].mxu0
    %426 = vmatprep.mubr.bf16.mxu0 0
    %427 = vmatmul.mubr.bf16.gmra.mrb[0].mxu0 %v165
    %v428 = vpop.f32.mrb[0].mxu0
    %v429 = vadd.f32 0.0, %v428
    %v430 = vpop.f32.mrb[0].mxu0
    %v431 = vpop.f32.mrb[0].mxu0
    %v432 = vadd.f32 0.0, %v431
    %v433 = vpop.f32.mrb[0].mxu0
    %434 = vmatprep.mubr.bf16.mxu0 0
    %435 = vmatmul.mubr.bf16.gmra.mrb[0].mxu0 %v166
    %v436 = vpop.f32.mrb[0].mxu0
    %v437 = vadd.f32 0.0, %v436
    %v438 = vpop.f32.mrb[0].mxu0
    %v439 = vpop.f32.mrb[0].mxu0
    %v440 = vadd.f32 0.0, %v439
    %v441 = vpop.f32.mrb[0].mxu0
    %442 = vmatprep.mubr.bf16.mxu0 0
    %443 = vmatmul.mubr.bf16.gmra.mrb[0].mxu0 %v167
    %v444 = vpop.f32.mrb[0].mxu0
    %v445 = vadd.f32 0.0, %v444
    %v446 = vpop.f32.mrb[0].mxu0
    %v447 = vpop.f32.mrb[0].mxu0
    %v448 = vadd.f32 0.0, %v447
    %v449 = vpop.f32.mrb[0].mxu0
    %450 = vmatprep.mubr.bf16.mxu0 0
    %451 = vmatmul.mubr.bf16.gmra.mrb[0].mxu0 %v168
    %v452 = vpop.f32.mrb[0].mxu0
    %v453 = vadd.f32 0.0, %v452
    %v454 = vpop.f32.mrb[0].mxu0
    %v455 = vpop.f32.mrb[0].mxu0
    %v456 = vadd.f32 0.0, %v455
    %v457 = vpop.f32.mrb[0].mxu0
    %458 = vdwg.mxu0
    %v475 = vunpack.c.l.b16 %v282
    %v476 = vunpack.c.l.b16 %v283
    %v477 = vunpack.c.l.b16 %v284
    %v478 = vunpack.c.l.b16 %v285
    %v479 = vunpack.c.l.b16 %v286
    %v480 = vunpack.c.l.b16 %v287
    %v481 = vunpack.c.l.b16 %v288
    %v482 = vunpack.c.l.b16 %v289
    %v483 = vunpack.c.l.b16 %v290
    %v484 = vunpack.c.l.b16 %v291
    %v485 = vunpack.c.l.b16 %v292
    %v486 = vunpack.c.l.b16 %v293
    %v487 = vunpack.c.l.b16 %v294
    %v488 = vunpack.c.l.b16 %v295
    %v489 = vunpack.c.l.b16 %v296
    %v490 = vunpack.c.l.b16 %v297
    %v491 = vpack.c.b16 %v476, %v475
    %v492 = vpack.c.b16 %v478, %v477
    %v493 = vpack.c.b16 %v480, %v479
    %v494 = vpack.c.b16 %v482, %v481
    %v495 = vpack.c.b16 %v484, %v483
    %v496 = vpack.c.b16 %v486, %v485
    %v497 = vpack.c.b16 %v488, %v487
    %v498 = vpack.c.b16 %v490, %v489
    %507 = vmatprep.subr.bf16.mxu0 0
    %508 = vmatpush1.bf16.msra.mxu0 %v491
    %509 = vmatprep.subr.bf16.mxu0 0
    %510 = vmatpush1.bf16.msra.mxu0 %v492
    %511 = vmatprep.subr.bf16.mxu0 0
    %512 = vmatpush1.bf16.msra.mxu0 %v493
    %513 = vmatprep.subr.bf16.mxu0 0
    %514 = vmatpush1.bf16.msra.mxu0 %v494
    %515 = vmatprep.subr.bf16.mxu0 0
    %516 = vmatpush1.bf16.msra.mxu0 %v495
    %517 = vmatprep.subr.bf16.mxu0 0
    %518 = vmatpush1.bf16.msra.mxu0 %v496
    %519 = vmatprep.subr.bf16.mxu0 0
    %520 = vmatpush1.bf16.msra.mxu0 %v497
    %521 = vmatprep.subr.bf16.mxu0 0
    %522 = vmatpush1.bf16.msra.mxu0 %v498
    %523 = vmatprep.subr.bf16.mxu0 0
    %524 = vmatpush1.bf16.msra.mxu0 0
    %525 = vmatprep.subr.bf16.mxu0 0
    %526 = vmatpush1.bf16.msra.mxu0 0
    %527 = vmatprep.subr.bf16.mxu0 0
    %528 = vmatpush1.bf16.msra.mxu0 0
    %529 = vmatprep.subr.bf16.mxu0 0
    %530 = vmatpush1.bf16.msra.mxu0 0
    %531 = vmatprep.subr.bf16.mxu0 0
    %532 = vmatpush1.bf16.msra.mxu0 0
    %533 = vmatprep.subr.bf16.mxu0 0
    %534 = vmatpush1.bf16.msra.mxu0 0
    %535 = vmatprep.subr.bf16.mxu0 0
    %536 = vmatpush1.bf16.msra.mxu0 0
    %537 = vmatprep.subr.bf16.mxu0 0
    %538 = vmatpush1.bf16.msra.mxu0 0
    %539 = vmatprep.mubr.bf16.mxu0 0
    %540 = vmatmul.mubr.bf16.gmra.mrb[0].mxu0 %v274
    %v541 = vpop.f32.mrb[0].mxu0
    %v542 = vadd.f32 %v397, %v541
    %v543 = vpop.f32.mrb[0].mxu0
    %v544 = vpop.f32.mrb[0].mxu0
    %v545 = vadd.f32 %v400, %v544
    %v546 = vpop.f32.mrb[0].mxu0
    %547 = vmatprep.mubr.bf16.mxu0 0
    %548 = vmatmul.mubr.bf16.gmra.mrb[0].mxu0 %v275
    %v549 = vpop.f32.mrb[0].mxu0
    %v550 = vadd.f32 %v405, %v549
    %v551 = vpop.f32.mrb[0].mxu0
    %v552 = vpop.f32.mrb[0].mxu0
    %v553 = vadd.f32 %v408, %v552
    %v554 = vpop.f32.mrb[0].mxu0
    %555 = vmatprep.mubr.bf16.mxu0 0
    %556 = vmatmul.mubr.bf16.gmra.mrb[0].mxu0 %v276
    %v557 = vpop.f32.mrb[0].mxu0
    %v558 = vadd.f32 %v413, %v557
    %v559 = vpop.f32.mrb[0].mxu0
    %v560 = vpop.f32.mrb[0].mxu0
    %v561 = vadd.f32 %v416, %v560
    %v562 = vpop.f32.mrb[0].mxu0
    %563 = vmatprep.mubr.bf16.mxu0 0
    %564 = vmatmul.mubr.bf16.gmra.mrb[0].mxu0 %v277
    %v565 = vpop.f32.mrb[0].mxu0
    %v566 = vadd.f32 %v421, %v565
    %v567 = vpop.f32.mrb[0].mxu0
    %v568 = vpop.f32.mrb[0].mxu0
    %v569 = vadd.f32 %v424, %v568
    %v570 = vpop.f32.mrb[0].mxu0
    %571 = vmatprep.mubr.bf16.mxu0 0
    %572 = vmatmul.mubr.bf16.gmra.mrb[0].mxu0 %v278
    %v573 = vpop.f32.mrb[0].mxu0
    %v574 = vadd.f32 %v429, %v573
    %v575 = vpop.f32.mrb[0].mxu0
    %v576 = vpop.f32.mrb[0].mxu0
    %v577 = vadd.f32 %v432, %v576
    %v578 = vpop.f32.mrb[0].mxu0
    %579 = vmatprep.mubr.bf16.mxu0 0
    %580 = vmatmul.mubr.bf16.gmra.mrb[0].mxu0 %v279
    %v581 = vpop.f32.mrb[0].mxu0
    %v582 = vadd.f32 %v437, %v581
    %v583 = vpop.f32.mrb[0].mxu0
    %v584 = vpop.f32.mrb[0].mxu0
    %v585 = vadd.f32 %v440, %v584
    %v586 = vpop.f32.mrb[0].mxu0
    %587 = vmatprep.mubr.bf16.mxu0 0
    %588 = vmatmul.mubr.bf16.gmra.mrb[0].mxu0 %v280
    %v589 = vpop.f32.mrb[0].mxu0
    %v590 = vadd.f32 %v445, %v589
    %v591 = vpop.f32.mrb[0].mxu0
    %v592 = vpop.f32.mrb[0].mxu0
    %v593 = vadd.f32 %v448, %v592
    %v594 = vpop.f32.mrb[0].mxu0
    %595 = vmatprep.mubr.bf16.mxu0 0
    %596 = vmatmul.mubr.bf16.gmra.mrb[0].mxu0 %v281
    %v597 = vpop.f32.mrb[0].mxu0
    %v598 = vadd.f32 %v453, %v597
    %v599 = vpop.f32.mrb[0].mxu0
    %v600 = vpop.f32.mrb[0].mxu0
    %v601 = vadd.f32 %v456, %v600
    %v602 = vpop.f32.mrb[0].mxu0
    %603 = vdwg.mxu0
    %v604 = vld [vmem:[%s4] sm:$0x1]
    %v606 = vlaneseq
    %v607 = vshrl.u32 %v606, 7
    %v608 = vsub.s32 0, %v607
    %v609 = vrot.slane %v604, %v608
    %v611 = vadd.f32 %v542, %v609
    %v612 = vadd.f32 %v545, %v609
    %v613 = vadd.f32 %v550, %v609
    %v614 = vadd.f32 %v553, %v609
    %v615 = vadd.f32 %v558, %v609
    %v616 = vadd.f32 %v561, %v609
    %v617 = vadd.f32 %v566, %v609
    %v618 = vadd.f32 %v569, %v609
    %v619 = vadd.f32 %v574, %v609
    %v620 = vadd.f32 %v577, %v609
    %v621 = vadd.f32 %v582, %v609
    %v622 = vadd.f32 %v585, %v609
    %v623 = vadd.f32 %v590, %v609
    %v624 = vadd.f32 %v593, %v609
    %v625 = vadd.f32 %v598, %v609
    %v626 = vadd.f32 %v601, %v609
    %v627 = vmax.f32 %v611, 0.0
    %v628 = vmax.f32 %v612, 0.0
    %v629 = vmax.f32 %v613, 0.0
    %v630 = vmax.f32 %v614, 0.0
    %v631 = vmax.f32 %v615, 0.0
    %v632 = vmax.f32 %v616, 0.0
    %v633 = vmax.f32 %v617, 0.0
    %v634 = vmax.f32 %v618, 0.0
    %v635 = vmax.f32 %v619, 0.0
    %v636 = vmax.f32 %v620, 0.0
    %v637 = vmax.f32 %v621, 0.0
    %v638 = vmax.f32 %v622, 0.0
    %v639 = vmax.f32 %v623, 0.0
    %v640 = vmax.f32 %v624, 0.0
    %v641 = vmax.f32 %v625, 0.0
    %v642 = vmax.f32 %v626, 0.0
    %v643 = vpack.c.bf16 %v628, %v627
    %v644 = vpack.c.bf16 %v630, %v629
    %v645 = vpack.c.bf16 %v632, %v631
    %v646 = vpack.c.bf16 %v634, %v633
    %v647 = vpack.c.bf16 %v636, %v635
    %v648 = vpack.c.bf16 %v638, %v637
    %v649 = vpack.c.bf16 %v640, %v639
    %v650 = vpack.c.bf16 %v642, %v641
    %651 = vmatprep.subr.bf16.mxu0 0
    %652 = vmatpush1.bf16.msra.mxu0 %v643
    %653 = vmatprep.subr.bf16.mxu0 0
    %654 = vmatpush1.bf16.msra.mxu0 %v644
    %655 = vmatprep.subr.bf16.mxu0 0
    %656 = vmatpush1.bf16.msra.mxu0 %v645
    %657 = vmatprep.subr.bf16.mxu0 0
    %658 = vmatpush1.bf16.msra.mxu0 %v646
    %659 = vmatprep.subr.bf16.mxu0 0
    %660 = vmatpush1.bf16.msra.mxu0 %v647
    %661 = vmatprep.subr.bf16.mxu0 0
    %662 = vmatpush1.bf16.msra.mxu0 %v648
    %663 = vmatprep.subr.bf16.mxu0 0
    %664 = vmatpush1.bf16.msra.mxu0 %v649
    %665 = vmatprep.subr.bf16.mxu0 0
    %666 = vmatpush1.bf16.msra.mxu0 %v650
    %667 = vmatprep.subr.bf16.mxu0 0
    %668 = vmatpush1.bf16.msra.mxu0 0
    %669 = vmatprep.subr.bf16.mxu0 0
    %670 = vmatpush1.bf16.msra.mxu0 0
    %671 = vmatprep.subr.bf16.mxu0 0
    %672 = vmatpush1.bf16.msra.mxu0 0
    %673 = vmatprep.subr.bf16.mxu0 0
    %674 = vmatpush1.bf16.msra.mxu0 0
    %675 = vmatprep.subr.bf16.mxu0 0
    %676 = vmatpush1.bf16.msra.mxu0 0
    %677 = vmatprep.subr.bf16.mxu0 0
    %678 = vmatpush1.bf16.msra.mxu0 0
    %679 = vmatprep.subr.bf16.mxu0 0
    %680 = vmatpush1.bf16.msra.mxu0 0
    %681 = vmatprep.subr.bf16.mxu0 0
    %682 = vmatpush1.bf16.msra.mxu0 0
    %683 = vmatprep.mubr.bf16.mxu0 0
    %684 = vmatmul.mubr.bf16.gmra.mrb[0].mxu0 %v113
    %v685 = vpop.f32.mrb[0].mxu0
    %v686 = vadd.f32 0.0, %v685
    %v687 = vpop.f32.mrb[0].mxu0
    %v688 = vpop.f32.mrb[0].mxu0
    %v689 = vadd.f32 0.0, %v688
    %v690 = vpop.f32.mrb[0].mxu0
    %691 = vmatprep.mubr.bf16.mxu0 0
    %692 = vmatmul.mubr.bf16.gmra.mrb[0].mxu0 %v114
    %v693 = vpop.f32.mrb[0].mxu0
    %v694 = vadd.f32 0.0, %v693
    %v695 = vpop.f32.mrb[0].mxu0
    %v696 = vpop.f32.mrb[0].mxu0
    %v697 = vadd.f32 0.0, %v696
    %v698 = vpop.f32.mrb[0].mxu0
    %699 = vmatprep.mubr.bf16.mxu0 0
    %700 = vmatmul.mubr.bf16.gmra.mrb[0].mxu0 %v115
    %v701 = vpop.f32.mrb[0].mxu0
    %v702 = vadd.f32 0.0, %v701
    %v703 = vpop.f32.mrb[0].mxu0
    %v704 = vpop.f32.mrb[0].mxu0
    %v705 = vadd.f32 0.0, %v704
    %v706 = vpop.f32.mrb[0].mxu0
    %707 = vmatprep.mubr.bf16.mxu0 0
    %708 = vmatmul.mubr.bf16.gmra.mrb[0].mxu0 %v116
    %v709 = vpop.f32.mrb[0].mxu0
    %v710 = vadd.f32 0.0, %v709
    %v711 = vpop.f32.mrb[0].mxu0
    %v712 = vpop.f32.mrb[0].mxu0
    %v713 = vadd.f32 0.0, %v712
    %v714 = vpop.f32.mrb[0].mxu0
    %715 = vmatprep.mubr.bf16.mxu0 0
    %716 = vmatmul.mubr.bf16.gmra.mrb[0].mxu0 %v117
    %v717 = vpop.f32.mrb[0].mxu0
    %v718 = vadd.f32 0.0, %v717
    %v719 = vpop.f32.mrb[0].mxu0
    %v720 = vpop.f32.mrb[0].mxu0
    %v721 = vadd.f32 0.0, %v720
    %v722 = vpop.f32.mrb[0].mxu0
    %723 = vmatprep.mubr.bf16.mxu0 0
    %724 = vmatmul.mubr.bf16.gmra.mrb[0].mxu0 %v118
    %v725 = vpop.f32.mrb[0].mxu0
    %v726 = vadd.f32 0.0, %v725
    %v727 = vpop.f32.mrb[0].mxu0
    %v728 = vpop.f32.mrb[0].mxu0
    %v729 = vadd.f32 0.0, %v728
    %v730 = vpop.f32.mrb[0].mxu0
    %731 = vmatprep.mubr.bf16.mxu0 0
    %732 = vmatmul.mubr.bf16.gmra.mrb[0].mxu0 %v119
    %v733 = vpop.f32.mrb[0].mxu0
    %v734 = vadd.f32 0.0, %v733
    %v735 = vpop.f32.mrb[0].mxu0
    %v736 = vpop.f32.mrb[0].mxu0
    %v737 = vadd.f32 0.0, %v736
    %v738 = vpop.f32.mrb[0].mxu0
    %739 = vmatprep.mubr.bf16.mxu0 0
    %740 = vmatmul.mubr.bf16.gmra.mrb[0].mxu0 %v120
    %v741 = vpop.f32.mrb[0].mxu0
    %v742 = vadd.f32 0.0, %v741
    %v743 = vpop.f32.mrb[0].mxu0
    %v744 = vpop.f32.mrb[0].mxu0
    %v745 = vadd.f32 0.0, %v744
    %v746 = vpop.f32.mrb[0].mxu0
    %747 = vdwg.mxu0
    %v748 = vpack.c.bf16 %v689, %v686
    %v749 = vpack.c.bf16 %v697, %v694
    %v750 = vpack.c.bf16 %v705, %v702
    %v751 = vpack.c.bf16 %v713, %v710
    %v752 = vpack.c.bf16 %v721, %v718
    %v753 = vpack.c.bf16 %v729, %v726
    %v754 = vpack.c.bf16 %v737, %v734
    %v755 = vpack.c.bf16 %v745, %v742
    %s756 = scalar_lea.vmem %s2, 64
    %v757 = vld [vmem:[%s756] sm:$0xf]
    %v758 = vld [vmem:[%s756 + $0x4] sm:$0xf]
    %v759 = vld [vmem:[%s756 + $0x8] sm:$0xf]
    %v760 = vld [vmem:[%s756 + $0xc] sm:$0xf]
    %v761 = vld [vmem:[%s756 + $0x10] sm:$0xf]
    %v762 = vld [vmem:[%s756 + $0x14] sm:$0xf]
    %v763 = vld [vmem:[%s756 + $0x18] sm:$0xf]
    %v764 = vld [vmem:[%s756 + $0x1c] sm:$0xf]
    %v765 = vld [vmem:[%s756 + $0x20] sm:$0xf]
    %v766 = vld [vmem:[%s756 + $0x24] sm:$0xf]
    %v767 = vld [vmem:[%s756 + $0x28] sm:$0xf]
    %v768 = vld [vmem:[%s756 + $0x2c] sm:$0xf]
    %v769 = vld [vmem:[%s756 + $0x30] sm:$0xf]
    %v770 = vld [vmem:[%s756 + $0x34] sm:$0xf]
    %v771 = vld [vmem:[%s756 + $0x38] sm:$0xf]
    %v772 = vld [vmem:[%s756 + $0x3c] sm:$0xf]
    %s773 = scalar_lea.vmem [#allocation4], 64
    %v774 = vld [vmem:[%s773] sm:$0xf]
    %v775 = vld [vmem:[%s773 + $0x4] sm:$0xf]
    %v776 = vld [vmem:[%s773 + $0x8] sm:$0xf]
    %v777 = vld [vmem:[%s773 + $0xc] sm:$0xf]
    %v778 = vld [vmem:[%s773 + $0x10] sm:$0xf]
    %v779 = vld [vmem:[%s773 + $0x14] sm:$0xf]
    %v780 = vld [vmem:[%s773 + $0x18] sm:$0xf]
    %v781 = vld [vmem:[%s773 + $0x1c] sm:$0xf]
    %v782 = vld [vmem:[%s773 + $0x20] sm:$0xf]
    %v783 = vld [vmem:[%s773 + $0x24] sm:$0xf]
    %v784 = vld [vmem:[%s773 + $0x28] sm:$0xf]
    %v785 = vld [vmem:[%s773 + $0x2c] sm:$0xf]
    %v786 = vld [vmem:[%s773 + $0x30] sm:$0xf]
    %v787 = vld [vmem:[%s773 + $0x34] sm:$0xf]
    %v788 = vld [vmem:[%s773 + $0x38] sm:$0xf]
    %v789 = vld [vmem:[%s773 + $0x3c] sm:$0xf]
    %v806 = vunpack.c.l.b16 %v774
    %v807 = vunpack.c.l.b16 %v775
    %v808 = vunpack.c.l.b16 %v776
    %v809 = vunpack.c.l.b16 %v777
    %v810 = vunpack.c.l.b16 %v778
    %v811 = vunpack.c.l.b16 %v779
    %v812 = vunpack.c.l.b16 %v780
    %v813 = vunpack.c.l.b16 %v781
    %v814 = vunpack.c.l.b16 %v782
    %v815 = vunpack.c.l.b16 %v783
    %v816 = vunpack.c.l.b16 %v784
    %v817 = vunpack.c.l.b16 %v785
    %v818 = vunpack.c.l.b16 %v786
    %v819 = vunpack.c.l.b16 %v787
    %v820 = vunpack.c.l.b16 %v788
    %v821 = vunpack.c.l.b16 %v789
    %v822 = vpack.c.b16 %v807, %v806
    %v823 = vpack.c.b16 %v809, %v808
    %v824 = vpack.c.b16 %v811, %v810
    %v825 = vpack.c.b16 %v813, %v812
    %v826 = vpack.c.b16 %v815, %v814
    %v827 = vpack.c.b16 %v817, %v816
    %v828 = vpack.c.b16 %v819, %v818
    %v829 = vpack.c.b16 %v821, %v820
    %838 = vmatprep.subr.bf16.mxu0 0
    %839 = vmatpush1.bf16.msra.mxu0 %v822
    %840 = vmatprep.subr.bf16.mxu0 0
    %841 = vmatpush1.bf16.msra.mxu0 %v823
    %842 = vmatprep.subr.bf16.mxu0 0
    %843 = vmatpush1.bf16.msra.mxu0 %v824
    %844 = vmatprep.subr.bf16.mxu0 0
    %845 = vmatpush1.bf16.msra.mxu0 %v825
    %846 = vmatprep.subr.bf16.mxu0 0
    %847 = vmatpush1.bf16.msra.mxu0 %v826
    %848 = vmatprep.subr.bf16.mxu0 0
    %849 = vmatpush1.bf16.msra.mxu0 %v827
    %850 = vmatprep.subr.bf16.mxu0 0
    %851 = vmatpush1.bf16.msra.mxu0 %v828
    %852 = vmatprep.subr.bf16.mxu0 0
    %853 = vmatpush1.bf16.msra.mxu0 %v829
    %854 = vmatprep.subr.bf16.mxu0 0
    %855 = vmatpush1.bf16.msra.mxu0 0
    %856 = vmatprep.subr.bf16.mxu0 0
    %857 = vmatpush1.bf16.msra.mxu0 0
    %858 = vmatprep.subr.bf16.mxu0 0
    %859 = vmatpush1.bf16.msra.mxu0 0
    %860 = vmatprep.subr.bf16.mxu0 0
    %861 = vmatpush1.bf16.msra.mxu0 0
    %862 = vmatprep.subr.bf16.mxu0 0
    %863 = vmatpush1.bf16.msra.mxu0 0
    %864 = vmatprep.subr.bf16.mxu0 0
    %865 = vmatpush1.bf16.msra.mxu0 0
    %866 = vmatprep.subr.bf16.mxu0 0
    %867 = vmatpush1.bf16.msra.mxu0 0
    %868 = vmatprep.subr.bf16.mxu0 0
    %869 = vmatpush1.bf16.msra.mxu0 0
    %870 = vmatprep.mubr.bf16.mxu0 0
    %871 = vmatmul.mubr.bf16.gmra.mrb[0].mxu0 %v643
    %v872 = vpop.f32.mrb[0].mxu0
    %v873 = vadd.f32 0.0, %v872
    %v874 = vpop.f32.mrb[0].mxu0
    %v875 = vpop.f32.mrb[0].mxu0
    %v876 = vadd.f32 0.0, %v875
    %v877 = vpop.f32.mrb[0].mxu0
    %878 = vmatprep.mubr.bf16.mxu0 0
    %879 = vmatmul.mubr.bf16.gmra.mrb[0].mxu0 %v644
    %v880 = vpop.f32.mrb[0].mxu0
    %v881 = vadd.f32 0.0, %v880
    %v882 = vpop.f32.mrb[0].mxu0
    %v883 = vpop.f32.mrb[0].mxu0
    %v884 = vadd.f32 0.0, %v883
    %v885 = vpop.f32.mrb[0].mxu0
    %886 = vmatprep.mubr.bf16.mxu0 0
    %887 = vmatmul.mubr.bf16.gmra.mrb[0].mxu0 %v645
    %v888 = vpop.f32.mrb[0].mxu0
    %v889 = vadd.f32 0.0, %v888
    %v890 = vpop.f32.mrb[0].mxu0
    %v891 = vpop.f32.mrb[0].mxu0
    %v892 = vadd.f32 0.0, %v891
    %v893 = vpop.f32.mrb[0].mxu0
    %894 = vmatprep.mubr.bf16.mxu0 0
    %895 = vmatmul.mubr.bf16.gmra.mrb[0].mxu0 %v646
    %v896 = vpop.f32.mrb[0].mxu0
    %v897 = vadd.f32 0.0, %v896
    %v898 = vpop.f32.mrb[0].mxu0
    %v899 = vpop.f32.mrb[0].mxu0
    %v900 = vadd.f32 0.0, %v899
    %v901 = vpop.f32.mrb[0].mxu0
    %902 = vmatprep.mubr.bf16.mxu0 0
    %903 = vmatmul.mubr.bf16.gmra.mrb[0].mxu0 %v647
    %v904 = vpop.f32.mrb[0].mxu0
    %v905 = vadd.f32 0.0, %v904
    %v906 = vpop.f32.mrb[0].mxu0
    %v907 = vpop.f32.mrb[0].mxu0
    %v908 = vadd.f32 0.0, %v907
    %v909 = vpop.f32.mrb[0].mxu0
    %910 = vmatprep.mubr.bf16.mxu0 0
    %911 = vmatmul.mubr.bf16.gmra.mrb[0].mxu0 %v648
    %v912 = vpop.f32.mrb[0].mxu0
    %v913 = vadd.f32 0.0, %v912
    %v914 = vpop.f32.mrb[0].mxu0
    %v915 = vpop.f32.mrb[0].mxu0
    %v916 = vadd.f32 0.0, %v915
    %v917 = vpop.f32.mrb[0].mxu0
    %918 = vmatprep.mubr.bf16.mxu0 0
    %919 = vmatmul.mubr.bf16.gmra.mrb[0].mxu0 %v649
    %v920 = vpop.f32.mrb[0].mxu0
    %v921 = vadd.f32 0.0, %v920
    %v922 = vpop.f32.mrb[0].mxu0
    %v923 = vpop.f32.mrb[0].mxu0
    %v924 = vadd.f32 0.0, %v923
    %v925 = vpop.f32.mrb[0].mxu0
    %926 = vmatprep.mubr.bf16.mxu0 0
    %927 = vmatmul.mubr.bf16.gmra.mrb[0].mxu0 %v650
    %v928 = vpop.f32.mrb[0].mxu0
    %v929 = vadd.f32 0.0, %v928
    %v930 = vpop.f32.mrb[0].mxu0
    %v931 = vpop.f32.mrb[0].mxu0
    %v932 = vadd.f32 0.0, %v931
    %v933 = vpop.f32.mrb[0].mxu0
    %934 = vdwg.mxu0
    %v951 = vunpack.c.l.b16 %v757
    %v952 = vunpack.c.l.b16 %v758
    %v953 = vunpack.c.l.b16 %v759
    %v954 = vunpack.c.l.b16 %v760
    %v955 = vunpack.c.l.b16 %v761
    %v956 = vunpack.c.l.b16 %v762
    %v957 = vunpack.c.l.b16 %v763
    %v958 = vunpack.c.l.b16 %v764
    %v959 = vunpack.c.l.b16 %v765
    %v960 = vunpack.c.l.b16 %v766
    %v961 = vunpack.c.l.b16 %v767
    %v962 = vunpack.c.l.b16 %v768
    %v963 = vunpack.c.l.b16 %v769
    %v964 = vunpack.c.l.b16 %v770
    %v965 = vunpack.c.l.b16 %v771
    %v966 = vunpack.c.l.b16 %v772
    %v967 = vpack.c.b16 %v952, %v951
    %v968 = vpack.c.b16 %v954, %v953
    %v969 = vpack.c.b16 %v956, %v955
    %v970 = vpack.c.b16 %v958, %v957
    %v971 = vpack.c.b16 %v960, %v959
    %v972 = vpack.c.b16 %v962, %v961
    %v973 = vpack.c.b16 %v964, %v963
    %v974 = vpack.c.b16 %v966, %v965
    %983 = vmatprep.subr.bf16.mxu0 0
    %984 = vmatpush1.bf16.msra.mxu0 %v967
    %985 = vmatprep.subr.bf16.mxu0 0
    %986 = vmatpush1.bf16.msra.mxu0 %v968
    %987 = vmatprep.subr.bf16.mxu0 0
    %988 = vmatpush1.bf16.msra.mxu0 %v969
    %989 = vmatprep.subr.bf16.mxu0 0
    %990 = vmatpush1.bf16.msra.mxu0 %v970
    %991 = vmatprep.subr.bf16.mxu0 0
    %992 = vmatpush1.bf16.msra.mxu0 %v971
    %993 = vmatprep.subr.bf16.mxu0 0
    %994 = vmatpush1.bf16.msra.mxu0 %v972
    %995 = vmatprep.subr.bf16.mxu0 0
    %996 = vmatpush1.bf16.msra.mxu0 %v973
    %997 = vmatprep.subr.bf16.mxu0 0
    %998 = vmatpush1.bf16.msra.mxu0 %v974
    %999 = vmatprep.subr.bf16.mxu0 0
    %1000 = vmatpush1.bf16.msra.mxu0 0
    %1001 = vmatprep.subr.bf16.mxu0 0
    %1002 = vmatpush1.bf16.msra.mxu0 0
    %1003 = vmatprep.subr.bf16.mxu0 0
    %1004 = vmatpush1.bf16.msra.mxu0 0
    %1005 = vmatprep.subr.bf16.mxu0 0
    %1006 = vmatpush1.bf16.msra.mxu0 0
    %1007 = vmatprep.subr.bf16.mxu0 0
    %1008 = vmatpush1.bf16.msra.mxu0 0
    %1009 = vmatprep.subr.bf16.mxu0 0
    %1010 = vmatpush1.bf16.msra.mxu0 0
    %1011 = vmatprep.subr.bf16.mxu0 0
    %1012 = vmatpush1.bf16.msra.mxu0 0
    %1013 = vmatprep.subr.bf16.mxu0 0
    %1014 = vmatpush1.bf16.msra.mxu0 0
    %1015 = vmatprep.mubr.bf16.mxu0 0
    %1016 = vmatmul.mubr.bf16.gmra.mrb[0].mxu0 %v748
    %v1017 = vpop.f32.mrb[0].mxu0
    %v1018 = vadd.f32 %v873, %v1017
    %v1019 = vpop.f32.mrb[0].mxu0
    %v1020 = vpop.f32.mrb[0].mxu0
    %v1021 = vadd.f32 %v876, %v1020
    %v1022 = vpop.f32.mrb[0].mxu0
    %1023 = vmatprep.mubr.bf16.mxu0 0
    %1024 = vmatmul.mubr.bf16.gmra.mrb[0].mxu0 %v749
    %v1025 = vpop.f32.mrb[0].mxu0
    %v1026 = vadd.f32 %v881, %v1025
    %v1027 = vpop.f32.mrb[0].mxu0
    %v1028 = vpop.f32.mrb[0].mxu0
    %v1029 = vadd.f32 %v884, %v1028
    %v1030 = vpop.f32.mrb[0].mxu0
    %1031 = vmatprep.mubr.bf16.mxu0 0
    %1032 = vmatmul.mubr.bf16.gmra.mrb[0].mxu0 %v750
    %v1033 = vpop.f32.mrb[0].mxu0
    %v1034 = vadd.f32 %v889, %v1033
    %v1035 = vpop.f32.mrb[0].mxu0
    %v1036 = vpop.f32.mrb[0].mxu0
    %v1037 = vadd.f32 %v892, %v1036
    %v1038 = vpop.f32.mrb[0].mxu0
    %1039 = vmatprep.mubr.bf16.mxu0 0
    %1040 = vmatmul.mubr.bf16.gmra.mrb[0].mxu0 %v751
    %v1041 = vpop.f32.mrb[0].mxu0
    %v1042 = vadd.f32 %v897, %v1041
    %v1043 = vpop.f32.mrb[0].mxu0
    %v1044 = vpop.f32.mrb[0].mxu0
    %v1045 = vadd.f32 %v900, %v1044
    %v1046 = vpop.f32.mrb[0].mxu0
    %1047 = vmatprep.mubr.bf16.mxu0 0
    %1048 = vmatmul.mubr.bf16.gmra.mrb[0].mxu0 %v752
    %v1049 = vpop.f32.mrb[0].mxu0
    %v1050 = vadd.f32 %v905, %v1049
    %v1051 = vpop.f32.mrb[0].mxu0
    %v1052 = vpop.f32.mrb[0].mxu0
    %v1053 = vadd.f32 %v908, %v1052
    %v1054 = vpop.f32.mrb[0].mxu0
    %1055 = vmatprep.mubr.bf16.mxu0 0
    %1056 = vmatmul.mubr.bf16.gmra.mrb[0].mxu0 %v753
    %v1057 = vpop.f32.mrb[0].mxu0
    %v1058 = vadd.f32 %v913, %v1057
    %v1059 = vpop.f32.mrb[0].mxu0
    %v1060 = vpop.f32.mrb[0].mxu0
    %v1061 = vadd.f32 %v916, %v1060
    %v1062 = vpop.f32.mrb[0].mxu0
    %1063 = vmatprep.mubr.bf16.mxu0 0
    %1064 = vmatmul.mubr.bf16.gmra.mrb[0].mxu0 %v754
    %v1065 = vpop.f32.mrb[0].mxu0
    %v1066 = vadd.f32 %v921, %v1065
    %v1067 = vpop.f32.mrb[0].mxu0
    %v1068 = vpop.f32.mrb[0].mxu0
    %v1069 = vadd.f32 %v924, %v1068
    %v1070 = vpop.f32.mrb[0].mxu0
    %1071 = vmatprep.mubr.bf16.mxu0 0
    %1072 = vmatmul.mubr.bf16.gmra.mrb[0].mxu0 %v755
    %v1073 = vpop.f32.mrb[0].mxu0
    %v1074 = vadd.f32 %v929, %v1073
    %v1075 = vpop.f32.mrb[0].mxu0
    %v1076 = vpop.f32.mrb[0].mxu0
    %v1077 = vadd.f32 %v932, %v1076
    %v1078 = vpop.f32.mrb[0].mxu0
    %1079 = vdwg.mxu0
    %s1080 = scalar_lea.vmem %s4, 1
    %v1081 = vld [vmem:[%s1080] sm:$0x1]
    %v1083 = vlaneseq
    %v1084 = vshrl.u32 %v1083, 7
    %v1085 = vsub.s32 0, %v1084
    %v1086 = vrot.slane %v1081, %v1085
    %v1088 = vadd.f32 %v1018, %v1086
    %v1089 = vadd.f32 %v1021, %v1086
    %v1090 = vadd.f32 %v1026, %v1086
    %v1091 = vadd.f32 %v1029, %v1086
    %v1092 = vadd.f32 %v1034, %v1086
    %v1093 = vadd.f32 %v1037, %v1086
    %v1094 = vadd.f32 %v1042, %v1086
    %v1095 = vadd.f32 %v1045, %v1086
    %v1096 = vadd.f32 %v1050, %v1086
    %v1097 = vadd.f32 %v1053, %v1086
    %v1098 = vadd.f32 %v1058, %v1086
    %v1099 = vadd.f32 %v1061, %v1086
    %v1100 = vadd.f32 %v1066, %v1086
    %v1101 = vadd.f32 %v1069, %v1086
    %v1102 = vadd.f32 %v1074, %v1086
    %v1103 = vadd.f32 %v1077, %v1086
    %v1104 = vmax.f32 %v1088, 0.0
    %v1105 = vmax.f32 %v1089, 0.0
    %v1106 = vmax.f32 %v1090, 0.0
    %v1107 = vmax.f32 %v1091, 0.0
    %v1108 = vmax.f32 %v1092, 0.0
    %v1109 = vmax.f32 %v1093, 0.0
    %v1110 = vmax.f32 %v1094, 0.0
    %v1111 = vmax.f32 %v1095, 0.0
    %v1112 = vmax.f32 %v1096, 0.0
    %v1113 = vmax.f32 %v1097, 0.0
    %v1114 = vmax.f32 %v1098, 0.0
    %v1115 = vmax.f32 %v1099, 0.0
    %v1116 = vmax.f32 %v1100, 0.0
    %v1117 = vmax.f32 %v1101, 0.0
    %v1118 = vmax.f32 %v1102, 0.0
    %v1119 = vmax.f32 %v1103, 0.0
    %v1120 = vpack.c.bf16 %v1105, %v1104
    %v1121 = vpack.c.bf16 %v1107, %v1106
    %v1122 = vpack.c.bf16 %v1109, %v1108
    %v1123 = vpack.c.bf16 %v1111, %v1110
    %v1124 = vpack.c.bf16 %v1113, %v1112
    %v1125 = vpack.c.bf16 %v1115, %v1114
    %v1126 = vpack.c.bf16 %v1117, %v1116
    %v1127 = vpack.c.bf16 %v1119, %v1118
    %1128 = vmatprep.subr.bf16.mxu0 0
    %1129 = vmatpush1.bf16.msra.mxu0 %v1120
    %1130 = vmatprep.subr.bf16.mxu0 0
    %1131 = vmatpush1.bf16.msra.mxu0 %v1121
    %1132 = vmatprep.subr.bf16.mxu0 0
    %1133 = vmatpush1.bf16.msra.mxu0 %v1122
    %1134 = vmatprep.subr.bf16.mxu0 0
    %1135 = vmatpush1.bf16.msra.mxu0 %v1123
    %1136 = vmatprep.subr.bf16.mxu0 0
    %1137 = vmatpush1.bf16.msra.mxu0 %v1124
    %1138 = vmatprep.subr.bf16.mxu0 0
    %1139 = vmatpush1.bf16.msra.mxu0 %v1125
    %1140 = vmatprep.subr.bf16.mxu0 0
    %1141 = vmatpush1.bf16.msra.mxu0 %v1126
    %1142 = vmatprep.subr.bf16.mxu0 0
    %1143 = vmatpush1.bf16.msra.mxu0 %v1127
    %1144 = vmatprep.subr.bf16.mxu0 0
    %1145 = vmatpush1.bf16.msra.mxu0 0
    %1146 = vmatprep.subr.bf16.mxu0 0
    %1147 = vmatpush1.bf16.msra.mxu0 0
    %1148 = vmatprep.subr.bf16.mxu0 0
    %1149 = vmatpush1.bf16.msra.mxu0 0
    %1150 = vmatprep.subr.bf16.mxu0 0
    %1151 = vmatpush1.bf16.msra.mxu0 0
    %1152 = vmatprep.subr.bf16.mxu0 0
    %1153 = vmatpush1.bf16.msra.mxu0 0
    %1154 = vmatprep.subr.bf16.mxu0 0
    %1155 = vmatpush1.bf16.msra.mxu0 0
    %1156 = vmatprep.subr.bf16.mxu0 0
    %1157 = vmatpush1.bf16.msra.mxu0 0
    %1158 = vmatprep.subr.bf16.mxu0 0
    %1159 = vmatpush1.bf16.msra.mxu0 0
    %1160 = vmatprep.mubr.bf16.mxu0 0
    %1161 = vmatmul.mubr.bf16.gmra.mrb[0].mxu0 %v113
    %v1162 = vpop.f32.mrb[0].mxu0
    %v1163 = vadd.f32 0.0, %v1162
    %v1164 = vpop.f32.mrb[0].mxu0
    %v1165 = vpop.f32.mrb[0].mxu0
    %v1166 = vadd.f32 0.0, %v1165
    %v1167 = vpop.f32.mrb[0].mxu0
    %1168 = vmatprep.mubr.bf16.mxu0 0
    %1169 = vmatmul.mubr.bf16.gmra.mrb[0].mxu0 %v114
    %v1170 = vpop.f32.mrb[0].mxu0
    %v1171 = vadd.f32 0.0, %v1170
    %v1172 = vpop.f32.mrb[0].mxu0
    %v1173 = vpop.f32.mrb[0].mxu0
    %v1174 = vadd.f32 0.0, %v1173
    %v1175 = vpop.f32.mrb[0].mxu0
    %1176 = vmatprep.mubr.bf16.mxu0 0
    %1177 = vmatmul.mubr.bf16.gmra.mrb[0].mxu0 %v115
    %v1178 = vpop.f32.mrb[0].mxu0
    %v1179 = vadd.f32 0.0, %v1178
    %v1180 = vpop.f32.mrb[0].mxu0
    %v1181 = vpop.f32.mrb[0].mxu0
    %v1182 = vadd.f32 0.0, %v1181
    %v1183 = vpop.f32.mrb[0].mxu0
    %1184 = vmatprep.mubr.bf16.mxu0 0
    %1185 = vmatmul.mubr.bf16.gmra.mrb[0].mxu0 %v116
    %v1186 = vpop.f32.mrb[0].mxu0
    %v1187 = vadd.f32 0.0, %v1186
    %v1188 = vpop.f32.mrb[0].mxu0
    %v1189 = vpop.f32.mrb[0].mxu0
    %v1190 = vadd.f32 0.0, %v1189
    %v1191 = vpop.f32.mrb[0].mxu0
    %1192 = vmatprep.mubr.bf16.mxu0 0
    %1193 = vmatmul.mubr.bf16.gmra.mrb[0].mxu0 %v117
    %v1194 = vpop.f32.mrb[0].mxu0
    %v1195 = vadd.f32 0.0, %v1194
    %v1196 = vpop.f32.mrb[0].mxu0
    %v1197 = vpop.f32.mrb[0].mxu0
    %v1198 = vadd.f32 0.0, %v1197
    %v1199 = vpop.f32.mrb[0].mxu0
    %1200 = vmatprep.mubr.bf16.mxu0 0
    %1201 = vmatmul.mubr.bf16.gmra.mrb[0].mxu0 %v118
    %v1202 = vpop.f32.mrb[0].mxu0
    %v1203 = vadd.f32 0.0, %v1202
    %v1204 = vpop.f32.mrb[0].mxu0
    %v1205 = vpop.f32.mrb[0].mxu0
    %v1206 = vadd.f32 0.0, %v1205
    %v1207 = vpop.f32.mrb[0].mxu0
    %1208 = vmatprep.mubr.bf16.mxu0 0
    %1209 = vmatmul.mubr.bf16.gmra.mrb[0].mxu0 %v119
    %v1210 = vpop.f32.mrb[0].mxu0
    %v1211 = vadd.f32 0.0, %v1210
    %v1212 = vpop.f32.mrb[0].mxu0
    %v1213 = vpop.f32.mrb[0].mxu0
    %v1214 = vadd.f32 0.0, %v1213
    %v1215 = vpop.f32.mrb[0].mxu0
    %1216 = vmatprep.mubr.bf16.mxu0 0
    %1217 = vmatmul.mubr.bf16.gmra.mrb[0].mxu0 %v120
    %v1218 = vpop.f32.mrb[0].mxu0
    %v1219 = vadd.f32 0.0, %v1218
    %v1220 = vpop.f32.mrb[0].mxu0
    %v1221 = vpop.f32.mrb[0].mxu0
    %v1222 = vadd.f32 0.0, %v1221
    %v1223 = vpop.f32.mrb[0].mxu0
    %1224 = vdwg.mxu0
    %v1225 = vpack.c.bf16 %v1166, %v1163
    %v1226 = vpack.c.bf16 %v1174, %v1171
    %v1227 = vpack.c.bf16 %v1182, %v1179
    %v1228 = vpack.c.bf16 %v1190, %v1187
    %v1229 = vpack.c.bf16 %v1198, %v1195
    %v1230 = vpack.c.bf16 %v1206, %v1203
    %v1231 = vpack.c.bf16 %v1214, %v1211
    %v1232 = vpack.c.bf16 %v1222, %v1219
    %s1233 = scalar_lea.vmem %s2, 128
    %v1234 = vld [vmem:[%s1233] sm:$0xf]
    %v1235 = vld [vmem:[%s1233 + $0x4] sm:$0xf]
    %v1236 = vld [vmem:[%s1233 + $0x8] sm:$0xf]
    %v1237 = vld [vmem:[%s1233 + $0xc] sm:$0xf]
    %v1238 = vld [vmem:[%s1233 + $0x10] sm:$0xf]
    %v1239 = vld [vmem:[%s1233 + $0x14] sm:$0xf]
    %v1240 = vld [vmem:[%s1233 + $0x18] sm:$0xf]
    %v1241 = vld [vmem:[%s1233 + $0x1c] sm:$0xf]
    %v1242 = vld [vmem:[%s1233 + $0x20] sm:$0xf]
    %v1243 = vld [vmem:[%s1233 + $0x24] sm:$0xf]
    %v1244 = vld [vmem:[%s1233 + $0x28] sm:$0xf]
    %v1245 = vld [vmem:[%s1233 + $0x2c] sm:$0xf]
    %v1246 = vld [vmem:[%s1233 + $0x30] sm:$0xf]
    %v1247 = vld [vmem:[%s1233 + $0x34] sm:$0xf]
    %v1248 = vld [vmem:[%s1233 + $0x38] sm:$0xf]
    %v1249 = vld [vmem:[%s1233 + $0x3c] sm:$0xf]
    %s1250 = scalar_lea.vmem [#allocation4], 128
    %v1251 = vld [vmem:[%s1250] sm:$0xf]
    %v1252 = vld [vmem:[%s1250 + $0x4] sm:$0xf]
    %v1253 = vld [vmem:[%s1250 + $0x8] sm:$0xf]
    %v1254 = vld [vmem:[%s1250 + $0xc] sm:$0xf]
    %v1255 = vld [vmem:[%s1250 + $0x10] sm:$0xf]
    %v1256 = vld [vmem:[%s1250 + $0x14] sm:$0xf]
    %v1257 = vld [vmem:[%s1250 + $0x18] sm:$0xf]
    %v1258 = vld [vmem:[%s1250 + $0x1c] sm:$0xf]
    %v1259 = vld [vmem:[%s1250 + $0x20] sm:$0xf]
    %v1260 = vld [vmem:[%s1250 + $0x24] sm:$0xf]
    %v1261 = vld [vmem:[%s1250 + $0x28] sm:$0xf]
    %v1262 = vld [vmem:[%s1250 + $0x2c] sm:$0xf]
    %v1263 = vld [vmem:[%s1250 + $0x30] sm:$0xf]
    %v1264 = vld [vmem:[%s1250 + $0x34] sm:$0xf]
    %v1265 = vld [vmem:[%s1250 + $0x38] sm:$0xf]
    %v1266 = vld [vmem:[%s1250 + $0x3c] sm:$0xf]
    %v1283 = vunpack.c.l.b16 %v1251
    %v1284 = vunpack.c.l.b16 %v1252
    %v1285 = vunpack.c.l.b16 %v1253
    %v1286 = vunpack.c.l.b16 %v1254
    %v1287 = vunpack.c.l.b16 %v1255
    %v1288 = vunpack.c.l.b16 %v1256
    %v1289 = vunpack.c.l.b16 %v1257
    %v1290 = vunpack.c.l.b16 %v1258
    %v1291 = vunpack.c.l.b16 %v1259
    %v1292 = vunpack.c.l.b16 %v1260
    %v1293 = vunpack.c.l.b16 %v1261
    %v1294 = vunpack.c.l.b16 %v1262
    %v1295 = vunpack.c.l.b16 %v1263
    %v1296 = vunpack.c.l.b16 %v1264
    %v1297 = vunpack.c.l.b16 %v1265
    %v1298 = vunpack.c.l.b16 %v1266
    %v1299 = vpack.c.b16 %v1284, %v1283
    %v1300 = vpack.c.b16 %v1286, %v1285
    %v1301 = vpack.c.b16 %v1288, %v1287
    %v1302 = vpack.c.b16 %v1290, %v1289
    %v1303 = vpack.c.b16 %v1292, %v1291
    %v1304 = vpack.c.b16 %v1294, %v1293
    %v1305 = vpack.c.b16 %v1296, %v1295
    %v1306 = vpack.c.b16 %v1298, %v1297
    %1315 = vmatprep.subr.bf16.mxu0 0
    %1316 = vmatpush1.bf16.msra.mxu0 %v1299
    %1317 = vmatprep.subr.bf16.mxu0 0
    %1318 = vmatpush1.bf16.msra.mxu0 %v1300
    %1319 = vmatprep.subr.bf16.mxu0 0
    %1320 = vmatpush1.bf16.msra.mxu0 %v1301
    %1321 = vmatprep.subr.bf16.mxu0 0
    %1322 = vmatpush1.bf16.msra.mxu0 %v1302
    %1323 = vmatprep.subr.bf16.mxu0 0
    %1324 = vmatpush1.bf16.msra.mxu0 %v1303
    %1325 = vmatprep.subr.bf16.mxu0 0
    %1326 = vmatpush1.bf16.msra.mxu0 %v1304
    %1327 = vmatprep.subr.bf16.mxu0 0
    %1328 = vmatpush1.bf16.msra.mxu0 %v1305
    %1329 = vmatprep.subr.bf16.mxu0 0
    %1330 = vmatpush1.bf16.msra.mxu0 %v1306
    %1331 = vmatprep.subr.bf16.mxu0 0
    %1332 = vmatpush1.bf16.msra.mxu0 0
    %1333 = vmatprep.subr.bf16.mxu0 0
    %1334 = vmatpush1.bf16.msra.mxu0 0
    %1335 = vmatprep.subr.bf16.mxu0 0
    %1336 = vmatpush1.bf16.msra.mxu0 0
    %1337 = vmatprep.subr.bf16.mxu0 0
    %1338 = vmatpush1.bf16.msra.mxu0 0
    %1339 = vmatprep.subr.bf16.mxu0 0
    %1340 = vmatpush1.bf16.msra.mxu0 0
    %1341 = vmatprep.subr.bf16.mxu0 0
    %1342 = vmatpush1.bf16.msra.mxu0 0
    %1343 = vmatprep.subr.bf16.mxu0 0
    %1344 = vmatpush1.bf16.msra.mxu0 0
    %1345 = vmatprep.subr.bf16.mxu0 0
    %1346 = vmatpush1.bf16.msra.mxu0 0
    %1347 = vmatprep.mubr.bf16.mxu0 0
    %1348 = vmatmul.mubr.bf16.gmra.mrb[0].mxu0 %v1120
    %v1349 = vpop.f32.mrb[0].mxu0
    %v1350 = vadd.f32 0.0, %v1349
    %v1351 = vpop.f32.mrb[0].mxu0
    %v1352 = vpop.f32.mrb[0].mxu0
    %v1353 = vadd.f32 0.0, %v1352
    %v1354 = vpop.f32.mrb[0].mxu0
    %1355 = vmatprep.mubr.bf16.mxu0 0
    %1356 = vmatmul.mubr.bf16.gmra.mrb[0].mxu0 %v1121
    %v1357 = vpop.f32.mrb[0].mxu0
    %v1358 = vadd.f32 0.0, %v1357
    %v1359 = vpop.f32.mrb[0].mxu0
    %v1360 = vpop.f32.mrb[0].mxu0
    %v1361 = vadd.f32 0.0, %v1360
    %v1362 = vpop.f32.mrb[0].mxu0
    %1363 = vmatprep.mubr.bf16.mxu0 0
    %1364 = vmatmul.mubr.bf16.gmra.mrb[0].mxu0 %v1122
    %v1365 = vpop.f32.mrb[0].mxu0
    %v1366 = vadd.f32 0.0, %v1365
    %v1367 = vpop.f32.mrb[0].mxu0
    %v1368 = vpop.f32.mrb[0].mxu0
    %v1369 = vadd.f32 0.0, %v1368
    %v1370 = vpop.f32.mrb[0].mxu0
    %1371 = vmatprep.mubr.bf16.mxu0 0
    %1372 = vmatmul.mubr.bf16.gmra.mrb[0].mxu0 %v1123
    %v1373 = vpop.f32.mrb[0].mxu0
    %v1374 = vadd.f32 0.0, %v1373
    %v1375 = vpop.f32.mrb[0].mxu0
    %v1376 = vpop.f32.mrb[0].mxu0
    %v1377 = vadd.f32 0.0, %v1376
    %v1378 = vpop.f32.mrb[0].mxu0
    %1379 = vmatprep.mubr.bf16.mxu0 0
    %1380 = vmatmul.mubr.bf16.gmra.mrb[0].mxu0 %v1124
    %v1381 = vpop.f32.mrb[0].mxu0
    %v1382 = vadd.f32 0.0, %v1381
    %v1383 = vpop.f32.mrb[0].mxu0
    %v1384 = vpop.f32.mrb[0].mxu0
    %v1385 = vadd.f32 0.0, %v1384
    %v1386 = vpop.f32.mrb[0].mxu0
    %1387 = vmatprep.mubr.bf16.mxu0 0
    %1388 = vmatmul.mubr.bf16.gmra.mrb[0].mxu0 %v1125
    %v1389 = vpop.f32.mrb[0].mxu0
    %v1390 = vadd.f32 0.0, %v1389
    %v1391 = vpop.f32.mrb[0].mxu0
    %v1392 = vpop.f32.mrb[0].mxu0
    %v1393 = vadd.f32 0.0, %v1392
    %v1394 = vpop.f32.mrb[0].mxu0
    %1395 = vmatprep.mubr.bf16.mxu0 0
    %1396 = vmatmul.mubr.bf16.gmra.mrb[0].mxu0 %v1126
    %v1397 = vpop.f32.mrb[0].mxu0
    %v1398 = vadd.f32 0.0, %v1397
    %v1399 = vpop.f32.mrb[0].mxu0
    %v1400 = vpop.f32.mrb[0].mxu0
    %v1401 = vadd.f32 0.0, %v1400
    %v1402 = vpop.f32.mrb[0].mxu0
    %1403 = vmatprep.mubr.bf16.mxu0 0
    %1404 = vmatmul.mubr.bf16.gmra.mrb[0].mxu0 %v1127
    %v1405 = vpop.f32.mrb[0].mxu0
    %v1406 = vadd.f32 0.0, %v1405
    %v1407 = vpop.f32.mrb[0].mxu0
    %v1408 = vpop.f32.mrb[0].mxu0
    %v1409 = vadd.f32 0.0, %v1408
    %v1410 = vpop.f32.mrb[0].mxu0
    %1411 = vdwg.mxu0
    %v1428 = vunpack.c.l.b16 %v1234
    %v1429 = vunpack.c.l.b16 %v1235
    %v1430 = vunpack.c.l.b16 %v1236
    %v1431 = vunpack.c.l.b16 %v1237
    %v1432 = vunpack.c.l.b16 %v1238
    %v1433 = vunpack.c.l.b16 %v1239
    %v1434 = vunpack.c.l.b16 %v1240
    %v1435 = vunpack.c.l.b16 %v1241
    %v1436 = vunpack.c.l.b16 %v1242
    %v1437 = vunpack.c.l.b16 %v1243
    %v1438 = vunpack.c.l.b16 %v1244
    %v1439 = vunpack.c.l.b16 %v1245
    %v1440 = vunpack.c.l.b16 %v1246
    %v1441 = vunpack.c.l.b16 %v1247
    %v1442 = vunpack.c.l.b16 %v1248
    %v1443 = vunpack.c.l.b16 %v1249
    %v1444 = vpack.c.b16 %v1429, %v1428
    %v1445 = vpack.c.b16 %v1431, %v1430
    %v1446 = vpack.c.b16 %v1433, %v1432
    %v1447 = vpack.c.b16 %v1435, %v1434
    %v1448 = vpack.c.b16 %v1437, %v1436
    %v1449 = vpack.c.b16 %v1439, %v1438
    %v1450 = vpack.c.b16 %v1441, %v1440
    %v1451 = vpack.c.b16 %v1443, %v1442
    %1460 = vmatprep.subr.bf16.mxu0 0
    %1461 = vmatpush1.bf16.msra.mxu0 %v1444
    %1462 = vmatprep.subr.bf16.mxu0 0
    %1463 = vmatpush1.bf16.msra.mxu0 %v1445
    %1464 = vmatprep.subr.bf16.mxu0 0
    %1465 = vmatpush1.bf16.msra.mxu0 %v1446
    %1466 = vmatprep.subr.bf16.mxu0 0
    %1467 = vmatpush1.bf16.msra.mxu0 %v1447
    %1468 = vmatprep.subr.bf16.mxu0 0
    %1469 = vmatpush1.bf16.msra.mxu0 %v1448
    %1470 = vmatprep.subr.bf16.mxu0 0
    %1471 = vmatpush1.bf16.msra.mxu0 %v1449
    %1472 = vmatprep.subr.bf16.mxu0 0
    %1473 = vmatpush1.bf16.msra.mxu0 %v1450
    %1474 = vmatprep.subr.bf16.mxu0 0
    %1475 = vmatpush1.bf16.msra.mxu0 %v1451
    %1476 = vmatprep.subr.bf16.mxu0 0
    %1477 = vmatpush1.bf16.msra.mxu0 0
    %1478 = vmatprep.subr.bf16.mxu0 0
    %1479 = vmatpush1.bf16.msra.mxu0 0
    %1480 = vmatprep.subr.bf16.mxu0 0
    %1481 = vmatpush1.bf16.msra.mxu0 0
    %1482 = vmatprep.subr.bf16.mxu0 0
    %1483 = vmatpush1.bf16.msra.mxu0 0
    %1484 = vmatprep.subr.bf16.mxu0 0
    %1485 = vmatpush1.bf16.msra.mxu0 0
    %1486 = vmatprep.subr.bf16.mxu0 0
    %1487 = vmatpush1.bf16.msra.mxu0 0
    %1488 = vmatprep.subr.bf16.mxu0 0
    %1489 = vmatpush1.bf16.msra.mxu0 0
    %1490 = vmatprep.subr.bf16.mxu0 0
    %1491 = vmatpush1.bf16.msra.mxu0 0
    %1492 = vmatprep.mubr.bf16.mxu0 0
    %1493 = vmatmul.mubr.bf16.gmra.mrb[0].mxu0 %v1225
    %v1494 = vpop.f32.mrb[0].mxu0
    %v1495 = vadd.f32 %v1350, %v1494
    %v1496 = vpop.f32.mrb[0].mxu0
    %v1497 = vpop.f32.mrb[0].mxu0
    %v1498 = vadd.f32 %v1353, %v1497
    %v1499 = vpop.f32.mrb[0].mxu0
    %1500 = vmatprep.mubr.bf16.mxu0 0
    %1501 = vmatmul.mubr.bf16.gmra.mrb[0].mxu0 %v1226
    %v1502 = vpop.f32.mrb[0].mxu0
    %v1503 = vadd.f32 %v1358, %v1502
    %v1504 = vpop.f32.mrb[0].mxu0
    %v1505 = vpop.f32.mrb[0].mxu0
    %v1506 = vadd.f32 %v1361, %v1505
    %v1507 = vpop.f32.mrb[0].mxu0
    %1508 = vmatprep.mubr.bf16.mxu0 0
    %1509 = vmatmul.mubr.bf16.gmra.mrb[0].mxu0 %v1227
    %v1510 = vpop.f32.mrb[0].mxu0
    %v1511 = vadd.f32 %v1366, %v1510
    %v1512 = vpop.f32.mrb[0].mxu0
    %v1513 = vpop.f32.mrb[0].mxu0
    %v1514 = vadd.f32 %v1369, %v1513
    %v1515 = vpop.f32.mrb[0].mxu0
    %1516 = vmatprep.mubr.bf16.mxu0 0
    %1517 = vmatmul.mubr.bf16.gmra.mrb[0].mxu0 %v1228
    %v1518 = vpop.f32.mrb[0].mxu0
    %v1519 = vadd.f32 %v1374, %v1518
    %v1520 = vpop.f32.mrb[0].mxu0
    %v1521 = vpop.f32.mrb[0].mxu0
    %v1522 = vadd.f32 %v1377, %v1521
    %v1523 = vpop.f32.mrb[0].mxu0
    %1524 = vmatprep.mubr.bf16.mxu0 0
    %1525 = vmatmul.mubr.bf16.gmra.mrb[0].mxu0 %v1229
    %v1526 = vpop.f32.mrb[0].mxu0
    %v1527 = vadd.f32 %v1382, %v1526
    %v1528 = vpop.f32.mrb[0].mxu0
    %v1529 = vpop.f32.mrb[0].mxu0
    %v1530 = vadd.f32 %v1385, %v1529
    %v1531 = vpop.f32.mrb[0].mxu0
    %1532 = vmatprep.mubr.bf16.mxu0 0
    %1533 = vmatmul.mubr.bf16.gmra.mrb[0].mxu0 %v1230
    %v1534 = vpop.f32.mrb[0].mxu0
    %v1535 = vadd.f32 %v1390, %v1534
    %v1536 = vpop.f32.mrb[0].mxu0
    %v1537 = vpop.f32.mrb[0].mxu0
    %v1538 = vadd.f32 %v1393, %v1537
    %v1539 = vpop.f32.mrb[0].mxu0
    %1540 = vmatprep.mubr.bf16.mxu0 0
    %1541 = vmatmul.mubr.bf16.gmra.mrb[0].mxu0 %v1231
    %v1542 = vpop.f32.mrb[0].mxu0
    %v1543 = vadd.f32 %v1398, %v1542
    %v1544 = vpop.f32.mrb[0].mxu0
    %v1545 = vpop.f32.mrb[0].mxu0
    %v1546 = vadd.f32 %v1401, %v1545
    %v1547 = vpop.f32.mrb[0].mxu0
    %1548 = vmatprep.mubr.bf16.mxu0 0
    %1549 = vmatmul.mubr.bf16.gmra.mrb[0].mxu0 %v1232
    %v1550 = vpop.f32.mrb[0].mxu0
    %v1551 = vadd.f32 %v1406, %v1550
    %v1552 = vpop.f32.mrb[0].mxu0
    %v1553 = vpop.f32.mrb[0].mxu0
    %v1554 = vadd.f32 %v1409, %v1553
    %v1555 = vpop.f32.mrb[0].mxu0
    %1556 = vdwg.mxu0
    %s1557 = scalar_lea.vmem %s4, 2
    %v1558 = vld [vmem:[%s1557] sm:$0x1]
    %v1560 = vlaneseq
    %v1561 = vshrl.u32 %v1560, 7
    %v1562 = vsub.s32 0, %v1561
    %v1563 = vrot.slane %v1558, %v1562
    %v1565 = vadd.f32 %v1495, %v1563
    %v1566 = vadd.f32 %v1498, %v1563
    %v1567 = vadd.f32 %v1503, %v1563
    %v1568 = vadd.f32 %v1506, %v1563
    %v1569 = vadd.f32 %v1511, %v1563
    %v1570 = vadd.f32 %v1514, %v1563
    %v1571 = vadd.f32 %v1519, %v1563
    %v1572 = vadd.f32 %v1522, %v1563
    %v1573 = vadd.f32 %v1527, %v1563
    %v1574 = vadd.f32 %v1530, %v1563
    %v1575 = vadd.f32 %v1535, %v1563
    %v1576 = vadd.f32 %v1538, %v1563
    %v1577 = vadd.f32 %v1543, %v1563
    %v1578 = vadd.f32 %v1546, %v1563
    %v1579 = vadd.f32 %v1551, %v1563
    %v1580 = vadd.f32 %v1554, %v1563
    %1581 = vst [vmem:[%s5] sm:$0xff] %v1565
    %1582 = vst [vmem:[%s5 + $0x8] sm:$0xff] %v1566
    %1583 = vst [vmem:[%s5 + $0x10] sm:$0xff] %v1567
    %1584 = vst [vmem:[%s5 + $0x18] sm:$0xff] %v1568
    %1585 = vst [vmem:[%s5 + $0x20] sm:$0xff] %v1569
    %1586 = vst [vmem:[%s5 + $0x28] sm:$0xff] %v1570
    %1587 = vst [vmem:[%s5 + $0x30] sm:$0xff] %v1571
    %1588 = vst [vmem:[%s5 + $0x38] sm:$0xff] %v1572
    %1589 = vst [vmem:[%s5 + $0x40] sm:$0xff] %v1573
    %1590 = vst [vmem:[%s5 + $0x48] sm:$0xff] %v1574
    %1591 = vst [vmem:[%s5 + $0x50] sm:$0xff] %v1575
    %1592 = vst [vmem:[%s5 + $0x58] sm:$0xff] %v1576
    %1593 = vst [vmem:[%s5 + $0x60] sm:$0xff] %v1577
    %1594 = vst [vmem:[%s5 + $0x68] sm:$0xff] %v1578
    %1595 = vst [vmem:[%s5 + $0x70] sm:$0xff] %v1579
    %1596 = vst [vmem:[%s5 + $0x78] sm:$0xff] %v1580
    // Predicated region
    $region30: #{gnn_forward.1} parent=1 // pred_check
      _
    $region31: #{gnn_forward.1} parent=1 // pred_check_branch
      %1598 = sbr.rel (0) target = $region33
    $region32: #{gnn_forward.1} parent=1 // pred_region
      _
    $region33: #{gnn_forward.1} parent=1 // pred_fallthru
      _
    // Predicated region
    $region34: #{gnn_forward.1} parent=1 // pred_check
      _
    $region35: #{gnn_forward.1} parent=1 // pred_check_branch
      %1600 = sbr.rel (0) target = $region37
    $region36: #{gnn_forward.1} parent=1 // pred_region
      _
    $region37: #{gnn_forward.1} parent=1 // pred_fallthru
      _
    %1601 = vsyncpa [#allocation3], 1
    %1602 = vsyncpa [#allocation5], 1

</llo_original>
